<compile_context>
chip_gen: v7x
topology: tpu7x:2x2x1
jax: 0.10.0
libtpu: 0.0.40
codegen_flags: <defaults>
</compile_context>

<pallas_src>
import jax
import jax.numpy as jnp
from jax.experimental import pallas as pl
from jax.experimental.pallas import tpu as pltpu


OUT_PAD = 128  # lane-dense output width


# ----------------------------- kernel ---------------------------------------

def make_edge_qnet_kernel(neighbors, n_nodes, block_b):
    """Fused forward kernel for a fixed graph (static incoming-neighbor lists)."""
    n, tb = n_nodes, block_b

    def kernel(x_ref,
               ms1_ref, mn1_ref, c1_ref,
               ms2_ref, mn2_ref, c2_ref,
               ms3_ref, mn3_ref, c3_ref,
               w4_ref, b4_ref, wo_ref, bo_ref,
               out_ref):
        f = x_ref.shape[-1]
        # Activations as a node-major slab [N*TB, F]; with TB == 8 every
        # per-node slice below is a sublane-aligned static slice.
        h0 = x_ref[...].reshape(n * tb, f)

        def node(v, i):                            # rows of node i: [TB, F]
            return v[i * tb:(i + 1) * tb, :]

        def edge_conv(h, ms, mn, c):
            s = jnp.dot(h, ms, preferred_element_type=jnp.float32) + c   # x_i part
            t = jnp.dot(h, mn, preferred_element_type=jnp.float32)       # x_j part
            rows = []
            for i in range(n):                     # static unroll over destinations
                nb = neighbors[i]
                m = node(t, nb[0])
                for j in nb[1:]:
                    m = jnp.maximum(m, node(t, j))
                rows.append(node(s, i) + m)        # self term + max over neighbours
            return jnp.concatenate(rows, axis=0)   # [N*TB, F]

        g1 = jnp.maximum(edge_conv(h0, ms1_ref[...], mn1_ref[...], c1_ref[...]), 0.0)
        g2 = jnp.maximum(edge_conv(g1, ms2_ref[...], mn2_ref[...], c2_ref[...]) + g1, 0.0)
        g3 = jnp.maximum(edge_conv(g2, ms3_ref[...], mn3_ref[...], c3_ref[...]) + g2, 0.0)

        # Head: flatten(g3) @ W4  ==  sum_i g3_node_i @ W4[i]   (no relayout).
        acc = jnp.dot(node(g3, 0), w4_ref[0], preferred_element_type=jnp.float32)
        for i in range(1, n):
            acc = acc + jnp.dot(node(g3, i), w4_ref[i],
                                preferred_element_type=jnp.float32)
        y = jnp.maximum(acc + b4_ref[...], 0.0)                          # [TB, H]
        out_ref[...] = (jnp.dot(y, wo_ref[...],
                                preferred_element_type=jnp.float32)
                        + bo_ref[...])                                   # [TB, 128]

    return kernel


# ----------------------------- wrapper ---------------------------------------

def edge_qnet_forward(x_batch, neighbors, fused_params, out_dim, *, block_b=8):
    """x_batch: [B, N, F] node features for B boards -> [B, out_dim] Q-values."""
    b, n, f = x_batch.shape
    (ms1, mn1, c1, ms2, mn2, c2, ms3, mn3, c3, w4r, b4, wo_p, bo_p) = fused_params
    out_pad = wo_p.shape[-1]
    assert b % block_b == 0, "batch must be a multiple of block_b"

    # Node-major layout [N, B, F]: per-node rows land on the sublane axis so
    # all in-kernel node slices are static & aligned (layout plumbing only).
    x_t = jnp.transpose(x_batch, (1, 0, 2))

    vmem = pltpu.MemorySpace.VMEM

    def full_spec(shape):
        nd = len(shape)

        def idx(i):
            return (0,) * nd

        return pl.BlockSpec(shape, idx, memory_space=vmem)

    grid = (b // block_b,)
    in_specs = [
        pl.BlockSpec((n, block_b, f), lambda i: (0, i, 0), memory_space=vmem),  # x
        full_spec(ms1.shape), full_spec(mn1.shape), full_spec(c1.shape),
        full_spec(ms2.shape), full_spec(mn2.shape), full_spec(c2.shape),
        full_spec(ms3.shape), full_spec(mn3.shape), full_spec(c3.shape),
        full_spec(w4r.shape), full_spec(b4.shape),
        full_spec(wo_p.shape), full_spec(bo_p.shape),
    ]
    out_spec = pl.BlockSpec((block_b, out_pad), lambda i: (i, 0), memory_space=vmem)

    out = pl.pallas_call(
        make_edge_qnet_kernel(neighbors, n, block_b),
        out_shape=jax.ShapeDtypeStruct((b, out_pad), jnp.float32),
        grid=grid,
        in_specs=in_specs,
        out_specs=out_spec,
        compiler_params=pltpu.CompilerParams(
            dimension_semantics=("parallel",)),      # 2nd TensorCore on v7x
    )(x_t, ms1, mn1, c1, ms2, mn2, c2, ms3, mn3, c3, w4r, b4, wo_p, bo_p)

    return out[:, :out_dim]


# --------------------- one-time (hoisted) preprocessing ----------------------

def build_neighbor_lists(edge_index, num_nodes):
    """Incoming-neighbor lists (PyG flow source->target): nbrs[i] = {j : (j->i) in E}."""
    src = [int(v) for v in jax.device_get(edge_index[0])]
    dst = [int(v) for v in jax.device_get(edge_index[1])]
    nbrs = [[] for _ in range(num_nodes)]
    for j, i in zip(src, dst):
        if j not in nbrs[i]:
            nbrs[i].append(j)
    # TODO(synk): PyG's zero-fill for isolated nodes under max aggregation is
    # not implemented; the fixed board graph has no isolated nodes.
    assert all(len(v) > 0 for v in nbrs), "every node needs >=1 incoming edge"
    return nbrs


def fuse_edgeconv_params(params, n_nodes, feat, out_pad=OUT_PAD):
    """Collapse each EdgeConv's (Linear,Linear,Linear) inner nn into
    (M_self, M_nbr, c) exactly, and lay out the head weights for the kernel."""
    conv, (w4, b4, wo, bo) = params[:18], params[18:]
    fused = []
    for layer in range(3):
        w1, b1, w2, b2, w3, b3 = conv[6 * layer:6 * layer + 6]
        w1_self, w1_nbr = w1[:feat], w1[feat:]     # rows for x_i / (x_j - x_i)
        m_self = (w1_self - w1_nbr) @ w2 @ w3
        m_nbr = w1_nbr @ w2 @ w3
        c = (b1 @ w2 + b2) @ w3 + b3               # [1, F]
        fused += [m_self, m_nbr, c]
    hidden = w4.shape[1]
    out_dim = wo.shape[1]
    w4r = w4.reshape(n_nodes, feat, hidden)        # per-node slices of l4
    wo_p = jnp.zeros((hidden, out_pad), jnp.float32).at[:, :out_dim].set(wo)
    bo_p = jnp.zeros((1, out_pad), jnp.float32).at[:, :out_dim].set(bo)
    return tuple(fused) + (w4r, b4, wo_p, bo_p)


# ----------------------------- reference -------------------------------------

def reference_forward_single(x, edge_index, params):
    """Pure-JAX EdgeConv reference (per-edge messages + scatter-max), one board."""
    conv, (w4, b4, wo, bo) = params[:18], params[18:]
    src, dst = edge_index[0], edge_index[1]

    def edge_conv(h, w1, b1, w2, b2, w3, b3):
        x_i, x_j = h[dst], h[src]                       # target, source
        z = jnp.concatenate([x_i, x_j - x_i], axis=-1)  # [E, 2F]
        m = ((z @ w1 + b1) @ w2 + b2) @ w3 + b3         # inner nn: 3 Linears
        out = jnp.full((h.shape[0], m.shape[-1]), -jnp.inf, m.dtype)
        return out.at[dst].max(m)                       # max aggregation

    g1 = jax.nn.relu(edge_conv(x, *conv[0:6]))
    g2 = jax.nn.relu(edge_conv(g1, *conv[6:12]) + g1)
    g3 = jax.nn.relu(edge_conv(g2, *conv[12:18]) + g2)
    y = jax.nn.relu(g3.reshape(-1) @ w4 + b4[0])
    return y @ wo + bo[0]


# ----------------------------- main -------------------------------------------

if __name__ == "__main__":
    board_size = 8
    hidden_layer_size = 32
    batch = 16                        # boards evaluated per call

    n_nodes = board_size              # one node per board position
    feat = board_size - 1             # EdgeConv feature width
    flat = board_size * feat          # l4 input after flatten
    out_dim = flat // 2               # output Q-values

    key = jax.random.PRNGKey(0)
    keys = iter(jax.random.split(key, 32))

    def rnd(shape, scale):
        return jax.random.normal(next(keys), shape, jnp.float32) * scale

    # Parameters in math layout ([in, out]); 3 EdgeConv inner MLPs + MLP head.
    params = []
    for _ in range(3):
        params += [rnd((2 * feat, 2 * feat), 0.3), rnd((1, 2 * feat), 0.1),
                   rnd((2 * feat, feat), 0.3),     rnd((1, feat), 0.1),
                   rnd((feat, feat), 0.3),         rnd((1, feat), 0.1)]
    params += [rnd((flat, hidden_layer_size), 0.1), rnd((1, hidden_layer_size), 0.1),
               rnd((hidden_layer_size, out_dim), 0.1), rnd((1, out_dim), 0.1)]
    params = tuple(params)

    # Batched node features and the fixed board graph (undirected ring).
    x_batch = jax.random.normal(next(keys), (batch, n_nodes, feat), jnp.float32)
    src = jnp.arange(n_nodes, dtype=jnp.int32)
    dst = (src + 1) % n_nodes
    edge_index = jnp.stack([jnp.concatenate([src, dst]),
                            jnp.concatenate([dst, src])], axis=0)

    # One-time preprocessing, hoisted out of the per-step path.
    neighbors = build_neighbor_lists(edge_index, n_nodes)
    fused = fuse_edgeconv_params(params, n_nodes, feat)

    fwd = jax.jit(lambda xb: edge_qnet_forward(xb, neighbors, fused, out_dim))
    out = jax.block_until_ready(fwd(x_batch))

    ref = jax.vmap(lambda xb: reference_forward_single(xb, edge_index, params))(x_batch)
    assert out.shape == (batch, out_dim)
    assert jnp.allclose(out, ref, atol=2e-4, rtol=2e-4), (out, ref)

    print("KERNEL_OK")
</pallas_src>

<mosaic_0001>
module attributes {stable_mosaic.version = 11 : i64} {
  func.func @kernel(%arg0: i32, %arg1: memref<8x8x7xf32, #tpu.memory_space<vmem>>, %arg2: memref<7x7xf32, #tpu.memory_space<vmem>>, %arg3: memref<7x7xf32, #tpu.memory_space<vmem>>, %arg4: memref<1x7xf32, #tpu.memory_space<vmem>>, %arg5: memref<7x7xf32, #tpu.memory_space<vmem>>, %arg6: memref<7x7xf32, #tpu.memory_space<vmem>>, %arg7: memref<1x7xf32, #tpu.memory_space<vmem>>, %arg8: memref<7x7xf32, #tpu.memory_space<vmem>>, %arg9: memref<7x7xf32, #tpu.memory_space<vmem>>, %arg10: memref<1x7xf32, #tpu.memory_space<vmem>>, %arg11: memref<8x7x32xf32, #tpu.memory_space<vmem>>, %arg12: memref<1x32xf32, #tpu.memory_space<vmem>>, %arg13: memref<32x128xf32, #tpu.memory_space<vmem>>, %arg14: memref<1x128xf32, #tpu.memory_space<vmem>>, %arg15: memref<8x128xf32, #tpu.memory_space<vmem>>) attributes {dimension_semantics = [#tpu.dimension_semantics<parallel>], iteration_bounds = array<i64: 2>, scalar_prefetch = 0 : i64, scratch_operands = 0 : i64, tpu.core_type = #tpu.core_type<tc>, window_params = [{transform_indices = @transform_0, window_bounds = array<i64: 8, 8, 7>}, {pipeline_mode = #tpu.pipeline_mode<synchronous>, transform_indices = @transform_1, window_bounds = array<i64: 7, 7>}, {pipeline_mode = #tpu.pipeline_mode<synchronous>, transform_indices = @transform_2, window_bounds = array<i64: 7, 7>}, {pipeline_mode = #tpu.pipeline_mode<synchronous>, transform_indices = @transform_3, window_bounds = array<i64: 1, 7>}, {pipeline_mode = #tpu.pipeline_mode<synchronous>, transform_indices = @transform_4, window_bounds = array<i64: 7, 7>}, {pipeline_mode = #tpu.pipeline_mode<synchronous>, transform_indices = @transform_5, window_bounds = array<i64: 7, 7>}, {pipeline_mode = #tpu.pipeline_mode<synchronous>, transform_indices = @transform_6, window_bounds = array<i64: 1, 7>}, {pipeline_mode = #tpu.pipeline_mode<synchronous>, transform_indices = @transform_7, window_bounds = array<i64: 7, 7>}, {pipeline_mode = #tpu.pipeline_mode<synchronous>, transform_indices = @transform_8, window_bounds = array<i64: 7, 7>}, {pipeline_mode = #tpu.pipeline_mode<synchronous>, transform_indices = @transform_9, window_bounds = array<i64: 1, 7>}, {pipeline_mode = #tpu.pipeline_mode<synchronous>, transform_indices = @transform_10, window_bounds = array<i64: 8, 7, 32>}, {pipeline_mode = #tpu.pipeline_mode<synchronous>, transform_indices = @transform_11, window_bounds = array<i64: 1, 32>}, {pipeline_mode = #tpu.pipeline_mode<synchronous>, transform_indices = @transform_12, window_bounds = array<i64: 32, 128>}, {pipeline_mode = #tpu.pipeline_mode<synchronous>, transform_indices = @transform_13, window_bounds = array<i64: 1, 128>}, {transform_indices = @transform_14, window_bounds = array<i64: 8, 128>}]} {
    %c0 = arith.constant 0 : index
    %c0_0 = arith.constant 0 : index
    %c0_1 = arith.constant 0 : index
    %0 = vector.load %arg1[%c0, %c0_0, %c0_1] : memref<8x8x7xf32, #tpu.memory_space<vmem>>, vector<8x8x7xf32>
    %1 = vector.shape_cast %0 : vector<8x8x7xf32> to vector<64x7xf32>
    %c0_2 = arith.constant 0 : index
    %c0_3 = arith.constant 0 : index
    %2 = vector.load %arg2[%c0_2, %c0_3] : memref<7x7xf32, #tpu.memory_space<vmem>>, vector<7x7xf32>
    %c0_4 = arith.constant 0 : index
    %c0_5 = arith.constant 0 : index
    %3 = vector.load %arg3[%c0_4, %c0_5] : memref<7x7xf32, #tpu.memory_space<vmem>>, vector<7x7xf32>
    %c0_6 = arith.constant 0 : index
    %c0_7 = arith.constant 0 : index
    %4 = vector.load %arg4[%c0_6, %c0_7] : memref<1x7xf32, #tpu.memory_space<vmem>>, vector<1x7xf32>
    %cst = arith.constant dense<0.000000e+00> : vector<64x7xf32>
    %5 = tpu.matmul %1, %2, %cst {dimension_numbers = #tpu.dot_dimension_numbers<[1], [0], [0], [1], [0, 0, 1, 1], [], []>} : vector<64x7xf32>, vector<7x7xf32>, vector<64x7xf32> -> vector<64x7xf32>
    %6 = vector.broadcast %4 : vector<1x7xf32> to vector<64x7xf32>
    %7 = arith.addf %5, %6 : vector<64x7xf32>
    %cst_8 = arith.constant dense<0.000000e+00> : vector<64x7xf32>
    %8 = tpu.matmul %1, %3, %cst_8 {dimension_numbers = #tpu.dot_dimension_numbers<[1], [0], [0], [1], [0, 0, 1, 1], [], []>} : vector<64x7xf32>, vector<7x7xf32>, vector<64x7xf32> -> vector<64x7xf32>
    %9 = vector.extract_strided_slice %8 {offsets = [56, 0], sizes = [8, 7], strides = [1, 1]} : vector<64x7xf32> to vector<8x7xf32>
    %10 = vector.extract_strided_slice %8 {offsets = [8, 0], sizes = [8, 7], strides = [1, 1]} : vector<64x7xf32> to vector<8x7xf32>
    %11 = arith.maximumf %9, %10 : vector<8x7xf32>
    %12 = vector.extract_strided_slice %7 {offsets = [0, 0], sizes = [8, 7], strides = [1, 1]} : vector<64x7xf32> to vector<8x7xf32>
    %13 = arith.addf %12, %11 : vector<8x7xf32>
    %14 = vector.extract_strided_slice %8 {offsets = [0, 0], sizes = [8, 7], strides = [1, 1]} : vector<64x7xf32> to vector<8x7xf32>
    %15 = vector.extract_strided_slice %8 {offsets = [16, 0], sizes = [8, 7], strides = [1, 1]} : vector<64x7xf32> to vector<8x7xf32>
    %16 = arith.maximumf %14, %15 : vector<8x7xf32>
    %17 = vector.extract_strided_slice %7 {offsets = [8, 0], sizes = [8, 7], strides = [1, 1]} : vector<64x7xf32> to vector<8x7xf32>
    %18 = arith.addf %17, %16 : vector<8x7xf32>
    %19 = vector.extract_strided_slice %8 {offsets = [8, 0], sizes = [8, 7], strides = [1, 1]} : vector<64x7xf32> to vector<8x7xf32>
    %20 = vector.extract_strided_slice %8 {offsets = [24, 0], sizes = [8, 7], strides = [1, 1]} : vector<64x7xf32> to vector<8x7xf32>
    %21 = arith.maximumf %19, %20 : vector<8x7xf32>
    %22 = vector.extract_strided_slice %7 {offsets = [16, 0], sizes = [8, 7], strides = [1, 1]} : vector<64x7xf32> to vector<8x7xf32>
    %23 = arith.addf %22, %21 : vector<8x7xf32>
    %24 = vector.extract_strided_slice %8 {offsets = [16, 0], sizes = [8, 7], strides = [1, 1]} : vector<64x7xf32> to vector<8x7xf32>
    %25 = vector.extract_strided_slice %8 {offsets = [32, 0], sizes = [8, 7], strides = [1, 1]} : vector<64x7xf32> to vector<8x7xf32>
    %26 = arith.maximumf %24, %25 : vector<8x7xf32>
    %27 = vector.extract_strided_slice %7 {offsets = [24, 0], sizes = [8, 7], strides = [1, 1]} : vector<64x7xf32> to vector<8x7xf32>
    %28 = arith.addf %27, %26 : vector<8x7xf32>
    %29 = vector.extract_strided_slice %8 {offsets = [24, 0], sizes = [8, 7], strides = [1, 1]} : vector<64x7xf32> to vector<8x7xf32>
    %30 = vector.extract_strided_slice %8 {offsets = [40, 0], sizes = [8, 7], strides = [1, 1]} : vector<64x7xf32> to vector<8x7xf32>
    %31 = arith.maximumf %29, %30 : vector<8x7xf32>
    %32 = vector.extract_strided_slice %7 {offsets = [32, 0], sizes = [8, 7], strides = [1, 1]} : vector<64x7xf32> to vector<8x7xf32>
    %33 = arith.addf %32, %31 : vector<8x7xf32>
    %34 = vector.extract_strided_slice %8 {offsets = [32, 0], sizes = [8, 7], strides = [1, 1]} : vector<64x7xf32> to vector<8x7xf32>
    %35 = vector.extract_strided_slice %8 {offsets = [48, 0], sizes = [8, 7], strides = [1, 1]} : vector<64x7xf32> to vector<8x7xf32>
    %36 = arith.maximumf %34, %35 : vector<8x7xf32>
    %37 = vector.extract_strided_slice %7 {offsets = [40, 0], sizes = [8, 7], strides = [1, 1]} : vector<64x7xf32> to vector<8x7xf32>
    %38 = arith.addf %37, %36 : vector<8x7xf32>
    %39 = vector.extract_strided_slice %8 {offsets = [40, 0], sizes = [8, 7], strides = [1, 1]} : vector<64x7xf32> to vector<8x7xf32>
    %40 = vector.extract_strided_slice %8 {offsets = [56, 0], sizes = [8, 7], strides = [1, 1]} : vector<64x7xf32> to vector<8x7xf32>
    %41 = arith.maximumf %39, %40 : vector<8x7xf32>
    %42 = vector.extract_strided_slice %7 {offsets = [48, 0], sizes = [8, 7], strides = [1, 1]} : vector<64x7xf32> to vector<8x7xf32>
    %43 = arith.addf %42, %41 : vector<8x7xf32>
    %44 = vector.extract_strided_slice %8 {offsets = [48, 0], sizes = [8, 7], strides = [1, 1]} : vector<64x7xf32> to vector<8x7xf32>
    %45 = vector.extract_strided_slice %8 {offsets = [0, 0], sizes = [8, 7], strides = [1, 1]} : vector<64x7xf32> to vector<8x7xf32>
    %46 = arith.maximumf %44, %45 : vector<8x7xf32>
    %47 = vector.extract_strided_slice %7 {offsets = [56, 0], sizes = [8, 7], strides = [1, 1]} : vector<64x7xf32> to vector<8x7xf32>
    %48 = arith.addf %47, %46 : vector<8x7xf32>
    %49 = tpu.concatenate %13, %18, %23, %28, %33, %38, %43, %48 in 0 : vector<8x7xf32>, vector<8x7xf32>, vector<8x7xf32>, vector<8x7xf32>, vector<8x7xf32>, vector<8x7xf32>, vector<8x7xf32>, vector<8x7xf32> -> vector<64x7xf32>
    %cst_9 = arith.constant 0.000000e+00 : f32
    %50 = vector.broadcast %cst_9 : f32 to vector<64x7xf32>
    %51 = arith.maximumf %49, %50 : vector<64x7xf32>
    %c0_10 = arith.constant 0 : index
    %c0_11 = arith.constant 0 : index
    %52 = vector.load %arg5[%c0_10, %c0_11] : memref<7x7xf32, #tpu.memory_space<vmem>>, vector<7x7xf32>
    %c0_12 = arith.constant 0 : index
    %c0_13 = arith.constant 0 : index
    %53 = vector.load %arg6[%c0_12, %c0_13] : memref<7x7xf32, #tpu.memory_space<vmem>>, vector<7x7xf32>
    %c0_14 = arith.constant 0 : index
    %c0_15 = arith.constant 0 : index
    %54 = vector.load %arg7[%c0_14, %c0_15] : memref<1x7xf32, #tpu.memory_space<vmem>>, vector<1x7xf32>
    %cst_16 = arith.constant dense<0.000000e+00> : vector<64x7xf32>
    %55 = tpu.matmul %51, %52, %cst_16 {dimension_numbers = #tpu.dot_dimension_numbers<[1], [0], [0], [1], [0, 0, 1, 1], [], []>} : vector<64x7xf32>, vector<7x7xf32>, vector<64x7xf32> -> vector<64x7xf32>
    %56 = vector.broadcast %54 : vector<1x7xf32> to vector<64x7xf32>
    %57 = arith.addf %55, %56 : vector<64x7xf32>
    %cst_17 = arith.constant dense<0.000000e+00> : vector<64x7xf32>
    %58 = tpu.matmul %51, %53, %cst_17 {dimension_numbers = #tpu.dot_dimension_numbers<[1], [0], [0], [1], [0, 0, 1, 1], [], []>} : vector<64x7xf32>, vector<7x7xf32>, vector<64x7xf32> -> vector<64x7xf32>
    %59 = vector.extract_strided_slice %58 {offsets = [56, 0], sizes = [8, 7], strides = [1, 1]} : vector<64x7xf32> to vector<8x7xf32>
    %60 = vector.extract_strided_slice %58 {offsets = [8, 0], sizes = [8, 7], strides = [1, 1]} : vector<64x7xf32> to vector<8x7xf32>
    %61 = arith.maximumf %59, %60 : vector<8x7xf32>
    %62 = vector.extract_strided_slice %57 {offsets = [0, 0], sizes = [8, 7], strides = [1, 1]} : vector<64x7xf32> to vector<8x7xf32>
    %63 = arith.addf %62, %61 : vector<8x7xf32>
    %64 = vector.extract_strided_slice %58 {offsets = [0, 0], sizes = [8, 7], strides = [1, 1]} : vector<64x7xf32> to vector<8x7xf32>
    %65 = vector.extract_strided_slice %58 {offsets = [16, 0], sizes = [8, 7], strides = [1, 1]} : vector<64x7xf32> to vector<8x7xf32>
    %66 = arith.maximumf %64, %65 : vector<8x7xf32>
    %67 = vector.extract_strided_slice %57 {offsets = [8, 0], sizes = [8, 7], strides = [1, 1]} : vector<64x7xf32> to vector<8x7xf32>
    %68 = arith.addf %67, %66 : vector<8x7xf32>
    %69 = vector.extract_strided_slice %58 {offsets = [8, 0], sizes = [8, 7], strides = [1, 1]} : vector<64x7xf32> to vector<8x7xf32>
    %70 = vector.extract_strided_slice %58 {offsets = [24, 0], sizes = [8, 7], strides = [1, 1]} : vector<64x7xf32> to vector<8x7xf32>
    %71 = arith.maximumf %69, %70 : vector<8x7xf32>
    %72 = vector.extract_strided_slice %57 {offsets = [16, 0], sizes = [8, 7], strides = [1, 1]} : vector<64x7xf32> to vector<8x7xf32>
    %73 = arith.addf %72, %71 : vector<8x7xf32>
    %74 = vector.extract_strided_slice %58 {offsets = [16, 0], sizes = [8, 7], strides = [1, 1]} : vector<64x7xf32> to vector<8x7xf32>
    %75 = vector.extract_strided_slice %58 {offsets = [32, 0], sizes = [8, 7], strides = [1, 1]} : vector<64x7xf32> to vector<8x7xf32>
    %76 = arith.maximumf %74, %75 : vector<8x7xf32>
    %77 = vector.extract_strided_slice %57 {offsets = [24, 0], sizes = [8, 7], strides = [1, 1]} : vector<64x7xf32> to vector<8x7xf32>
    %78 = arith.addf %77, %76 : vector<8x7xf32>
    %79 = vector.extract_strided_slice %58 {offsets = [24, 0], sizes = [8, 7], strides = [1, 1]} : vector<64x7xf32> to vector<8x7xf32>
    %80 = vector.extract_strided_slice %58 {offsets = [40, 0], sizes = [8, 7], strides = [1, 1]} : vector<64x7xf32> to vector<8x7xf32>
    %81 = arith.maximumf %79, %80 : vector<8x7xf32>
    %82 = vector.extract_strided_slice %57 {offsets = [32, 0], sizes = [8, 7], strides = [1, 1]} : vector<64x7xf32> to vector<8x7xf32>
    %83 = arith.addf %82, %81 : vector<8x7xf32>
    %84 = vector.extract_strided_slice %58 {offsets = [32, 0], sizes = [8, 7], strides = [1, 1]} : vector<64x7xf32> to vector<8x7xf32>
    %85 = vector.extract_strided_slice %58 {offsets = [48, 0], sizes = [8, 7], strides = [1, 1]} : vector<64x7xf32> to vector<8x7xf32>
    %86 = arith.maximumf %84, %85 : vector<8x7xf32>
    %87 = vector.extract_strided_slice %57 {offsets = [40, 0], sizes = [8, 7], strides = [1, 1]} : vector<64x7xf32> to vector<8x7xf32>
    %88 = arith.addf %87, %86 : vector<8x7xf32>
    %89 = vector.extract_strided_slice %58 {offsets = [40, 0], sizes = [8, 7], strides = [1, 1]} : vector<64x7xf32> to vector<8x7xf32>
    %90 = vector.extract_strided_slice %58 {offsets = [56, 0], sizes = [8, 7], strides = [1, 1]} : vector<64x7xf32> to vector<8x7xf32>
    %91 = arith.maximumf %89, %90 : vector<8x7xf32>
    %92 = vector.extract_strided_slice %57 {offsets = [48, 0], sizes = [8, 7], strides = [1, 1]} : vector<64x7xf32> to vector<8x7xf32>
    %93 = arith.addf %92, %91 : vector<8x7xf32>
    %94 = vector.extract_strided_slice %58 {offsets = [48, 0], sizes = [8, 7], strides = [1, 1]} : vector<64x7xf32> to vector<8x7xf32>
    %95 = vector.extract_strided_slice %58 {offsets = [0, 0], sizes = [8, 7], strides = [1, 1]} : vector<64x7xf32> to vector<8x7xf32>
    %96 = arith.maximumf %94, %95 : vector<8x7xf32>
    %97 = vector.extract_strided_slice %57 {offsets = [56, 0], sizes = [8, 7], strides = [1, 1]} : vector<64x7xf32> to vector<8x7xf32>
    %98 = arith.addf %97, %96 : vector<8x7xf32>
    %99 = tpu.concatenate %63, %68, %73, %78, %83, %88, %93, %98 in 0 : vector<8x7xf32>, vector<8x7xf32>, vector<8x7xf32>, vector<8x7xf32>, vector<8x7xf32>, vector<8x7xf32>, vector<8x7xf32>, vector<8x7xf32> -> vector<64x7xf32>
    %100 = arith.addf %99, %51 : vector<64x7xf32>
    %cst_18 = arith.constant 0.000000e+00 : f32
    %101 = vector.broadcast %cst_18 : f32 to vector<64x7xf32>
    %102 = arith.maximumf %100, %101 : vector<64x7xf32>
    %c0_19 = arith.constant 0 : index
    %c0_20 = arith.constant 0 : index
    %103 = vector.load %arg8[%c0_19, %c0_20] : memref<7x7xf32, #tpu.memory_space<vmem>>, vector<7x7xf32>
    %c0_21 = arith.constant 0 : index
    %c0_22 = arith.constant 0 : index
    %104 = vector.load %arg9[%c0_21, %c0_22] : memref<7x7xf32, #tpu.memory_space<vmem>>, vector<7x7xf32>
    %c0_23 = arith.constant 0 : index
    %c0_24 = arith.constant 0 : index
    %105 = vector.load %arg10[%c0_23, %c0_24] : memref<1x7xf32, #tpu.memory_space<vmem>>, vector<1x7xf32>
    %cst_25 = arith.constant dense<0.000000e+00> : vector<64x7xf32>
    %106 = tpu.matmul %102, %103, %cst_25 {dimension_numbers = #tpu.dot_dimension_numbers<[1], [0], [0], [1], [0, 0, 1, 1], [], []>} : vector<64x7xf32>, vector<7x7xf32>, vector<64x7xf32> -> vector<64x7xf32>
    %107 = vector.broadcast %105 : vector<1x7xf32> to vector<64x7xf32>
    %108 = arith.addf %106, %107 : vector<64x7xf32>
    %cst_26 = arith.constant dense<0.000000e+00> : vector<64x7xf32>
    %109 = tpu.matmul %102, %104, %cst_26 {dimension_numbers = #tpu.dot_dimension_numbers<[1], [0], [0], [1], [0, 0, 1, 1], [], []>} : vector<64x7xf32>, vector<7x7xf32>, vector<64x7xf32> -> vector<64x7xf32>
    %110 = vector.extract_strided_slice %109 {offsets = [56, 0], sizes = [8, 7], strides = [1, 1]} : vector<64x7xf32> to vector<8x7xf32>
    %111 = vector.extract_strided_slice %109 {offsets = [8, 0], sizes = [8, 7], strides = [1, 1]} : vector<64x7xf32> to vector<8x7xf32>
    %112 = arith.maximumf %110, %111 : vector<8x7xf32>
    %113 = vector.extract_strided_slice %108 {offsets = [0, 0], sizes = [8, 7], strides = [1, 1]} : vector<64x7xf32> to vector<8x7xf32>
    %114 = arith.addf %113, %112 : vector<8x7xf32>
    %115 = vector.extract_strided_slice %109 {offsets = [0, 0], sizes = [8, 7], strides = [1, 1]} : vector<64x7xf32> to vector<8x7xf32>
    %116 = vector.extract_strided_slice %109 {offsets = [16, 0], sizes = [8, 7], strides = [1, 1]} : vector<64x7xf32> to vector<8x7xf32>
    %117 = arith.maximumf %115, %116 : vector<8x7xf32>
    %118 = vector.extract_strided_slice %108 {offsets = [8, 0], sizes = [8, 7], strides = [1, 1]} : vector<64x7xf32> to vector<8x7xf32>
    %119 = arith.addf %118, %117 : vector<8x7xf32>
    %120 = vector.extract_strided_slice %109 {offsets = [8, 0], sizes = [8, 7], strides = [1, 1]} : vector<64x7xf32> to vector<8x7xf32>
    %121 = vector.extract_strided_slice %109 {offsets = [24, 0], sizes = [8, 7], strides = [1, 1]} : vector<64x7xf32> to vector<8x7xf32>
    %122 = arith.maximumf %120, %121 : vector<8x7xf32>
    %123 = vector.extract_strided_slice %108 {offsets = [16, 0], sizes = [8, 7], strides = [1, 1]} : vector<64x7xf32> to vector<8x7xf32>
    %124 = arith.addf %123, %122 : vector<8x7xf32>
    %125 = vector.extract_strided_slice %109 {offsets = [16, 0], sizes = [8, 7], strides = [1, 1]} : vector<64x7xf32> to vector<8x7xf32>
    %126 = vector.extract_strided_slice %109 {offsets = [32, 0], sizes = [8, 7], strides = [1, 1]} : vector<64x7xf32> to vector<8x7xf32>
    %127 = arith.maximumf %125, %126 : vector<8x7xf32>
    %128 = vector.extract_strided_slice %108 {offsets = [24, 0], sizes = [8, 7], strides = [1, 1]} : vector<64x7xf32> to vector<8x7xf32>
    %129 = arith.addf %128, %127 : vector<8x7xf32>
    %130 = vector.extract_strided_slice %109 {offsets = [24, 0], sizes = [8, 7], strides = [1, 1]} : vector<64x7xf32> to vector<8x7xf32>
    %131 = vector.extract_strided_slice %109 {offsets = [40, 0], sizes = [8, 7], strides = [1, 1]} : vector<64x7xf32> to vector<8x7xf32>
    %132 = arith.maximumf %130, %131 : vector<8x7xf32>
    %133 = vector.extract_strided_slice %108 {offsets = [32, 0], sizes = [8, 7], strides = [1, 1]} : vector<64x7xf32> to vector<8x7xf32>
    %134 = arith.addf %133, %132 : vector<8x7xf32>
    %135 = vector.extract_strided_slice %109 {offsets = [32, 0], sizes = [8, 7], strides = [1, 1]} : vector<64x7xf32> to vector<8x7xf32>
    %136 = vector.extract_strided_slice %109 {offsets = [48, 0], sizes = [8, 7], strides = [1, 1]} : vector<64x7xf32> to vector<8x7xf32>
    %137 = arith.maximumf %135, %136 : vector<8x7xf32>
    %138 = vector.extract_strided_slice %108 {offsets = [40, 0], sizes = [8, 7], strides = [1, 1]} : vector<64x7xf32> to vector<8x7xf32>
    %139 = arith.addf %138, %137 : vector<8x7xf32>
    %140 = vector.extract_strided_slice %109 {offsets = [40, 0], sizes = [8, 7], strides = [1, 1]} : vector<64x7xf32> to vector<8x7xf32>
    %141 = vector.extract_strided_slice %109 {offsets = [56, 0], sizes = [8, 7], strides = [1, 1]} : vector<64x7xf32> to vector<8x7xf32>
    %142 = arith.maximumf %140, %141 : vector<8x7xf32>
    %143 = vector.extract_strided_slice %108 {offsets = [48, 0], sizes = [8, 7], strides = [1, 1]} : vector<64x7xf32> to vector<8x7xf32>
    %144 = arith.addf %143, %142 : vector<8x7xf32>
    %145 = vector.extract_strided_slice %109 {offsets = [48, 0], sizes = [8, 7], strides = [1, 1]} : vector<64x7xf32> to vector<8x7xf32>
    %146 = vector.extract_strided_slice %109 {offsets = [0, 0], sizes = [8, 7], strides = [1, 1]} : vector<64x7xf32> to vector<8x7xf32>
    %147 = arith.maximumf %145, %146 : vector<8x7xf32>
    %148 = vector.extract_strided_slice %108 {offsets = [56, 0], sizes = [8, 7], strides = [1, 1]} : vector<64x7xf32> to vector<8x7xf32>
    %149 = arith.addf %148, %147 : vector<8x7xf32>
    %150 = tpu.concatenate %114, %119, %124, %129, %134, %139, %144, %149 in 0 : vector<8x7xf32>, vector<8x7xf32>, vector<8x7xf32>, vector<8x7xf32>, vector<8x7xf32>, vector<8x7xf32>, vector<8x7xf32>, vector<8x7xf32> -> vector<64x7xf32>
    %151 = arith.addf %150, %102 : vector<64x7xf32>
    %cst_27 = arith.constant 0.000000e+00 : f32
    %152 = vector.broadcast %cst_27 : f32 to vector<64x7xf32>
    %153 = arith.maximumf %151, %152 : vector<64x7xf32>
    %154 = vector.extract_strided_slice %153 {offsets = [0, 0], sizes = [8, 7], strides = [1, 1]} : vector<64x7xf32> to vector<8x7xf32>
    %c0_28 = arith.constant 0 : index
    %c0_29 = arith.constant 0 : index
    %c0_30 = arith.constant 0 : index
    %155 = vector.load %arg11[%c0_28, %c0_29, %c0_30] : memref<8x7x32xf32, #tpu.memory_space<vmem>>, vector<1x7x32xf32>
    %156 = vector.shape_cast %155 : vector<1x7x32xf32> to vector<7x32xf32>
    %cst_31 = arith.constant dense<0.000000e+00> : vector<8x32xf32>
    %157 = tpu.matmul %154, %156, %cst_31 {dimension_numbers = #tpu.dot_dimension_numbers<[1], [0], [0], [1], [0, 0, 1, 1], [], []>} : vector<8x7xf32>, vector<7x32xf32>, vector<8x32xf32> -> vector<8x32xf32>
    %158 = vector.extract_strided_slice %153 {offsets = [8, 0], sizes = [8, 7], strides = [1, 1]} : vector<64x7xf32> to vector<8x7xf32>
    %c1 = arith.constant 1 : index
    %c0_32 = arith.constant 0 : index
    %c0_33 = arith.constant 0 : index
    %159 = vector.load %arg11[%c1, %c0_32, %c0_33] : memref<8x7x32xf32, #tpu.memory_space<vmem>>, vector<1x7x32xf32>
    %160 = vector.shape_cast %159 : vector<1x7x32xf32> to vector<7x32xf32>
    %cst_34 = arith.constant dense<0.000000e+00> : vector<8x32xf32>
    %161 = tpu.matmul %158, %160, %cst_34 {dimension_numbers = #tpu.dot_dimension_numbers<[1], [0], [0], [1], [0, 0, 1, 1], [], []>} : vector<8x7xf32>, vector<7x32xf32>, vector<8x32xf32> -> vector<8x32xf32>
    %162 = arith.addf %157, %161 : vector<8x32xf32>
    %163 = vector.extract_strided_slice %153 {offsets = [16, 0], sizes = [8, 7], strides = [1, 1]} : vector<64x7xf32> to vector<8x7xf32>
    %c2 = arith.constant 2 : index
    %c0_35 = arith.constant 0 : index
    %c0_36 = arith.constant 0 : index
    %164 = vector.load %arg11[%c2, %c0_35, %c0_36] : memref<8x7x32xf32, #tpu.memory_space<vmem>>, vector<1x7x32xf32>
    %165 = vector.shape_cast %164 : vector<1x7x32xf32> to vector<7x32xf32>
    %cst_37 = arith.constant dense<0.000000e+00> : vector<8x32xf32>
    %166 = tpu.matmul %163, %165, %cst_37 {dimension_numbers = #tpu.dot_dimension_numbers<[1], [0], [0], [1], [0, 0, 1, 1], [], []>} : vector<8x7xf32>, vector<7x32xf32>, vector<8x32xf32> -> vector<8x32xf32>
    %167 = arith.addf %162, %166 : vector<8x32xf32>
    %168 = vector.extract_strided_slice %153 {offsets = [24, 0], sizes = [8, 7], strides = [1, 1]} : vector<64x7xf32> to vector<8x7xf32>
    %c3 = arith.constant 3 : index
    %c0_38 = arith.constant 0 : index
    %c0_39 = arith.constant 0 : index
    %169 = vector.load %arg11[%c3, %c0_38, %c0_39] : memref<8x7x32xf32, #tpu.memory_space<vmem>>, vector<1x7x32xf32>
    %170 = vector.shape_cast %169 : vector<1x7x32xf32> to vector<7x32xf32>
    %cst_40 = arith.constant dense<0.000000e+00> : vector<8x32xf32>
    %171 = tpu.matmul %168, %170, %cst_40 {dimension_numbers = #tpu.dot_dimension_numbers<[1], [0], [0], [1], [0, 0, 1, 1], [], []>} : vector<8x7xf32>, vector<7x32xf32>, vector<8x32xf32> -> vector<8x32xf32>
    %172 = arith.addf %167, %171 : vector<8x32xf32>
    %173 = vector.extract_strided_slice %153 {offsets = [32, 0], sizes = [8, 7], strides = [1, 1]} : vector<64x7xf32> to vector<8x7xf32>
    %c4 = arith.constant 4 : index
    %c0_41 = arith.constant 0 : index
    %c0_42 = arith.constant 0 : index
    %174 = vector.load %arg11[%c4, %c0_41, %c0_42] : memref<8x7x32xf32, #tpu.memory_space<vmem>>, vector<1x7x32xf32>
    %175 = vector.shape_cast %174 : vector<1x7x32xf32> to vector<7x32xf32>
    %cst_43 = arith.constant dense<0.000000e+00> : vector<8x32xf32>
    %176 = tpu.matmul %173, %175, %cst_43 {dimension_numbers = #tpu.dot_dimension_numbers<[1], [0], [0], [1], [0, 0, 1, 1], [], []>} : vector<8x7xf32>, vector<7x32xf32>, vector<8x32xf32> -> vector<8x32xf32>
    %177 = arith.addf %172, %176 : vector<8x32xf32>
    %178 = vector.extract_strided_slice %153 {offsets = [40, 0], sizes = [8, 7], strides = [1, 1]} : vector<64x7xf32> to vector<8x7xf32>
    %c5 = arith.constant 5 : index
    %c0_44 = arith.constant 0 : index
    %c0_45 = arith.constant 0 : index
    %179 = vector.load %arg11[%c5, %c0_44, %c0_45] : memref<8x7x32xf32, #tpu.memory_space<vmem>>, vector<1x7x32xf32>
    %180 = vector.shape_cast %179 : vector<1x7x32xf32> to vector<7x32xf32>
    %cst_46 = arith.constant dense<0.000000e+00> : vector<8x32xf32>
    %181 = tpu.matmul %178, %180, %cst_46 {dimension_numbers = #tpu.dot_dimension_numbers<[1], [0], [0], [1], [0, 0, 1, 1], [], []>} : vector<8x7xf32>, vector<7x32xf32>, vector<8x32xf32> -> vector<8x32xf32>
    %182 = arith.addf %177, %181 : vector<8x32xf32>
    %183 = vector.extract_strided_slice %153 {offsets = [48, 0], sizes = [8, 7], strides = [1, 1]} : vector<64x7xf32> to vector<8x7xf32>
    %c6 = arith.constant 6 : index
    %c0_47 = arith.constant 0 : index
    %c0_48 = arith.constant 0 : index
    %184 = vector.load %arg11[%c6, %c0_47, %c0_48] : memref<8x7x32xf32, #tpu.memory_space<vmem>>, vector<1x7x32xf32>
    %185 = vector.shape_cast %184 : vector<1x7x32xf32> to vector<7x32xf32>
    %cst_49 = arith.constant dense<0.000000e+00> : vector<8x32xf32>
    %186 = tpu.matmul %183, %185, %cst_49 {dimension_numbers = #tpu.dot_dimension_numbers<[1], [0], [0], [1], [0, 0, 1, 1], [], []>} : vector<8x7xf32>, vector<7x32xf32>, vector<8x32xf32> -> vector<8x32xf32>
    %187 = arith.addf %182, %186 : vector<8x32xf32>
    %188 = vector.extract_strided_slice %153 {offsets = [56, 0], sizes = [8, 7], strides = [1, 1]} : vector<64x7xf32> to vector<8x7xf32>
    %c7 = arith.constant 7 : index
    %c0_50 = arith.constant 0 : index
    %c0_51 = arith.constant 0 : index
    %189 = vector.load %arg11[%c7, %c0_50, %c0_51] : memref<8x7x32xf32, #tpu.memory_space<vmem>>, vector<1x7x32xf32>
    %190 = vector.shape_cast %189 : vector<1x7x32xf32> to vector<7x32xf32>
    %cst_52 = arith.constant dense<0.000000e+00> : vector<8x32xf32>
    %191 = tpu.matmul %188, %190, %cst_52 {dimension_numbers = #tpu.dot_dimension_numbers<[1], [0], [0], [1], [0, 0, 1, 1], [], []>} : vector<8x7xf32>, vector<7x32xf32>, vector<8x32xf32> -> vector<8x32xf32>
    %192 = arith.addf %187, %191 : vector<8x32xf32>
    %c0_53 = arith.constant 0 : index
    %c0_54 = arith.constant 0 : index
    %193 = vector.load %arg12[%c0_53, %c0_54] : memref<1x32xf32, #tpu.memory_space<vmem>>, vector<1x32xf32>
    %194 = vector.broadcast %193 : vector<1x32xf32> to vector<8x32xf32>
    %195 = arith.addf %192, %194 : vector<8x32xf32>
    %cst_55 = arith.constant 0.000000e+00 : f32
    %196 = vector.broadcast %cst_55 : f32 to vector<8x32xf32>
    %197 = arith.maximumf %195, %196 : vector<8x32xf32>
    %c0_56 = arith.constant 0 : index
    %c0_57 = arith.constant 0 : index
    %198 = vector.load %arg13[%c0_56, %c0_57] : memref<32x128xf32, #tpu.memory_space<vmem>>, vector<32x128xf32>
    %cst_58 = arith.constant dense<0.000000e+00> : vector<8x128xf32>
    %199 = tpu.matmul %197, %198, %cst_58 {dimension_numbers = #tpu.dot_dimension_numbers<[1], [0], [0], [1], [0, 0, 1, 1], [], []>} : vector<8x32xf32>, vector<32x128xf32>, vector<8x128xf32> -> vector<8x128xf32>
    %c0_59 = arith.constant 0 : index
    %c0_60 = arith.constant 0 : index
    %200 = vector.load %arg14[%c0_59, %c0_60] : memref<1x128xf32, #tpu.memory_space<vmem>>, vector<1x128xf32>
    %201 = vector.broadcast %200 : vector<1x128xf32> to vector<8x128xf32>
    %202 = arith.addf %199, %201 : vector<8x128xf32>
    %c0_61 = arith.constant 0 : index
    %c0_62 = arith.constant 0 : index
    %203 = vector.load %arg15[%c0_61, %c0_62] : memref<8x128xf32, #tpu.memory_space<vmem>>, vector<8x128xf32>
    tpu.vector_store %arg15[%c0_61, %c0_62], %202 {strides = array<i32>} : memref<8x128xf32, #tpu.memory_space<vmem>>, vector<8x128xf32>,
    return
  }
  func.func @transform_0(%arg0: i32) -> (i32, i32, i32) {
    %c0_i32 = arith.constant 0 : i32
    %c0_i32_0 = arith.constant 0 : i32
    %c0_i32_1 = arith.constant 0 : i32
    return %c0_i32, %arg0, %c0_i32_0 : i32, i32, i32
  }
  func.func @transform_1(%arg0: i32) -> (i32, i32) {
    %c0_i32 = arith.constant 0 : i32
    %c0_i32_0 = arith.constant 0 : i32
    %c0_i32_1 = arith.constant 0 : i32
    return %c0_i32, %c0_i32_0 : i32, i32
  }
  func.func @transform_2(%arg0: i32) -> (i32, i32) {
    %c0_i32 = arith.constant 0 : i32
    %c0_i32_0 = arith.constant 0 : i32
    %c0_i32_1 = arith.constant 0 : i32
    return %c0_i32, %c0_i32_0 : i32, i32
  }
  func.func @transform_3(%arg0: i32) -> (i32, i32) {
    %c0_i32 = arith.constant 0 : i32
    %c0_i32_0 = arith.constant 0 : i32
    %c0_i32_1 = arith.constant 0 : i32
    return %c0_i32, %c0_i32_0 : i32, i32
  }
  func.func @transform_4(%arg0: i32) -> (i32, i32) {
    %c0_i32 = arith.constant 0 : i32
    %c0_i32_0 = arith.constant 0 : i32
    %c0_i32_1 = arith.constant 0 : i32
    return %c0_i32, %c0_i32_0 : i32, i32
  }
  func.func @transform_5(%arg0: i32) -> (i32, i32) {
    %c0_i32 = arith.constant 0 : i32
    %c0_i32_0 = arith.constant 0 : i32
    %c0_i32_1 = arith.constant 0 : i32
    return %c0_i32, %c0_i32_0 : i32, i32
  }
  func.func @transform_6(%arg0: i32) -> (i32, i32) {
    %c0_i32 = arith.constant 0 : i32
    %c0_i32_0 = arith.constant 0 : i32
    %c0_i32_1 = arith.constant 0 : i32
    return %c0_i32, %c0_i32_0 : i32, i32
  }
  func.func @transform_7(%arg0: i32) -> (i32, i32) {
    %c0_i32 = arith.constant 0 : i32
    %c0_i32_0 = arith.constant 0 : i32
    %c0_i32_1 = arith.constant 0 : i32
    return %c0_i32, %c0_i32_0 : i32, i32
  }
  func.func @transform_8(%arg0: i32) -> (i32, i32) {
    %c0_i32 = arith.constant 0 : i32
    %c0_i32_0 = arith.constant 0 : i32
    %c0_i32_1 = arith.constant 0 : i32
    return %c0_i32, %c0_i32_0 : i32, i32
  }
  func.func @transform_9(%arg0: i32) -> (i32, i32) {
    %c0_i32 = arith.constant 0 : i32
    %c0_i32_0 = arith.constant 0 : i32
    %c0_i32_1 = arith.constant 0 : i32
    return %c0_i32, %c0_i32_0 : i32, i32
  }
  func.func @transform_10(%arg0: i32) -> (i32, i32, i32) {
    %c0_i32 = arith.constant 0 : i32
    %c0_i32_0 = arith.constant 0 : i32
    %c0_i32_1 = arith.constant 0 : i32
    %c0_i32_2 = arith.constant 0 : i32
    return %c0_i32, %c0_i32_0, %c0_i32_1 : i32, i32, i32
  }
  func.func @transform_11(%arg0: i32) -> (i32, i32) {
    %c0_i32 = arith.constant 0 : i32
    %c0_i32_0 = arith.constant 0 : i32
    %c0_i32_1 = arith.constant 0 : i32
    return %c0_i32, %c0_i32_0 : i32, i32
  }
  func.func @transform_12(%arg0: i32) -> (i32, i32) {
    %c0_i32 = arith.constant 0 : i32
    %c0_i32_0 = arith.constant 0 : i32
    %c0_i32_1 = arith.constant 0 : i32
    return %c0_i32, %c0_i32_0 : i32, i32
  }
  func.func @transform_13(%arg0: i32) -> (i32, i32) {
    %c0_i32 = arith.constant 0 : i32
    %c0_i32_0 = arith.constant 0 : i32
    %c0_i32_1 = arith.constant 0 : i32
    return %c0_i32, %c0_i32_0 : i32, i32
  }
  func.func @transform_14(%arg0: i32) -> (i32, i32) {
    %c0_i32 = arith.constant 0 : i32
    %c0_i32_0 = arith.constant 0 : i32
    return %arg0, %c0_i32 : i32, i32
  }
}

</mosaic_0001>

<llo_original>
// kernel: _lambda_.1
$region0: #{_lambda_.1}
  #allocation0 [shape = 'u32[]', space=smem, size = 0x4, offset = 0x4, fixed_abs, tag = 'smem constant byte address 0x4 - core index']
  #allocation1 [shape = 'u32[144,128]{1,0:T(1,128)}', space=vmem, size = 0x12000, scoped, tag = 'internal scratch']
  %s0 = inlined_call_operand.vmem [shape: f32[8,16,7], index: 0, kind: input, shape index: {}]
  %s1 = inlined_call_operand.vmem [shape: f32[7,7], index: 1, kind: input, shape index: {}]
  %s2 = inlined_call_operand.vmem [shape: f32[7,7], index: 2, kind: input, shape index: {}]
  %s3 = inlined_call_operand.vmem [shape: f32[1,7], index: 3, kind: input, shape index: {}]
  %s4 = inlined_call_operand.vmem [shape: f32[7,7], index: 4, kind: input, shape index: {}]
  %s5 = inlined_call_operand.vmem [shape: f32[7,7], index: 5, kind: input, shape index: {}]
  %s6 = inlined_call_operand.vmem [shape: f32[1,7], index: 6, kind: input, shape index: {}]
  %s7 = inlined_call_operand.vmem [shape: f32[7,7], index: 7, kind: input, shape index: {}]
  %s8 = inlined_call_operand.vmem [shape: f32[7,7], index: 8, kind: input, shape index: {}]
  %s9 = inlined_call_operand.vmem [shape: f32[1,7], index: 9, kind: input, shape index: {}]
  %s10 = inlined_call_operand.vmem [shape: f32[8,7,32], index: 10, kind: input, shape index: {}]
  %s11 = inlined_call_operand.vmem [shape: f32[1,32], index: 11, kind: input, shape index: {}]
  %s12 = inlined_call_operand.vmem [shape: f32[32,128], index: 12, kind: input, shape index: {}]
  %s13 = inlined_call_operand.vmem [shape: f32[1,128], index: 13, kind: input, shape index: {}]
  %s14 = inlined_call_operand.hbm [shape: f32[16,128], index: 14, kind: output, shape index: {}]
  %s15 = sld [smem:[#allocation0]]
  $region127: #{_lambda_.1} parent=0
    _
  %s17 = ssub.s32 1, %s15
  %s18 = scalar_select 0, %s17, %s15
  $region1: #{_lambda_.1} parent=0
    #allocation2 [shape = 'u8[65536]{0}', space=vmem, size = 0x10000, scoped, tag = 'input window, operand 0']
    #allocation3 [shape = 'u8[8192]{0}', space=vmem, size = 0x2000, scoped, tag = 'output window, operand 0']
    #allocation4 [shape = 's32[2]{0}', space=sflag, size = 0x8, scoped, tag = 'scoped memory for _lambda_.1']
    %19 = vsyncpa [#allocation4], 0
    %s20 = scalar_lea.sflag [#allocation4], 1
    %21 = vsyncpa %s20, 0
    loop: start=0, step=1, limit=4
    $region2: #{_lambda_.1} parent=1 // loop_pre_header
      _
    $region3: #{_lambda_.1} parent=1 // loop_header
      %s23 = sphi 0, %s27
      %p24 = scmp.ge.s32.totalorder %s23, 4
      %s33 = sphi 0, %s35
      %s36 = sphi 0, %s33
      %s37 = sphi 0, %s36
      %s53 = sphi 0, %s37
      %s57 = sphi 0, %s57
      %s59 = sphi 0, %s57
      %s60 = sphi 0, %s59
      %s74 = sphi 0, %s60
      %s78 = sphi 0, %s78
      %s80 = sphi 0, %s78
      %s81 = sphi 0, %s80
      %s95 = sphi 0, %s81
      %s99 = sphi 0, %s99
      %s101 = sphi 0, %s99
      %s102 = sphi 0, %s101
      %s116 = sphi 0, %s102
      %s120 = sphi 0, %s120
      %s122 = sphi 0, %s120
      %s123 = sphi 0, %s122
      %s137 = sphi 0, %s123
      %s141 = sphi 0, %s141
      %s143 = sphi 0, %s141
      %s144 = sphi 0, %s143
      %s158 = sphi 0, %s144
      %s162 = sphi 0, %s162
      %s164 = sphi 0, %s162
      %s165 = sphi 0, %s164
      %s179 = sphi 0, %s165
      %s183 = sphi 0, %s183
      %s185 = sphi 0, %s183
      %s186 = sphi 0, %s185
      %s200 = sphi 0, %s186
      %s204 = sphi 0, %s204
      %s206 = sphi 0, %s204
      %s207 = sphi 0, %s206
      %s221 = sphi 0, %s207
      %s225 = sphi 0, %s225
      %s227 = sphi 0, %s225
      %s228 = sphi 0, %s227
      %s242 = sphi 0, %s228
      %s246 = sphi 0, %s246
      %s248 = sphi 0, %s246
      %s249 = sphi 0, %s248
      %s263 = sphi 0, %s249
      %s267 = sphi 0, %s267
      %s269 = sphi 0, %s267
      %s270 = sphi 0, %s269
      %s284 = sphi 0, %s270
      %s288 = sphi 0, %s288
      %s290 = sphi 0, %s288
      %s291 = sphi 0, %s290
      %s305 = sphi 0, %s291
      %s309 = sphi 0, %s309
      %s311 = sphi 0, %s309
      %s312 = sphi 0, %s311
      %s326 = sphi 0, %s312
      %s332 = sphi 0, %s334
      %s335 = sphi 0, %s332
      %s336 = sphi 0, %s335
      %s352 = sphi 0, %s336
    $region4: #{_lambda_.1} parent=1 // loop_header_branch
      %26 = sbr.rel (%p24) target = $region8
    $region5: #{_lambda_.1} parent=1 // loop_body
      %s28 = ssub.s32 %s23, 1
      %s29 = ssub.s32 %s23, 2
      %s30 = sadd.s32 %s23, 1
      %s31 = ssub.s32 %s23, %s30
      %p32 = scmp.eq.s32.totalorder %s31, 0
      %s34 = sadd.s32 %s33, 1
      %s35 = scalar_select %p32, %s33, %s34
      %p38 = pneg %p32
      %p39 = scmp.eq.s32.totalorder %s23, 1
      %p40 = por %p38, %p39
      %p41 = scmp.ne.s32.totalorder %s33, %s36
      %p42 = scmp.eq.s32.totalorder %s23, 0
      %p43 = por %p41, %p42
      %p44 = scmp.ne.s32.totalorder %s33, %s36
      %p45 = scmp.eq.s32.totalorder %s28, 1
      %p46 = por %p44, %p45
      %p47 = scmp.ne.s32.totalorder %s36, %s37
      %p48 = scmp.eq.s32.totalorder %s28, 0
      %p49 = por %p47, %p48
      %p50 = scmp.ne.s32.totalorder %s36, %s37
      %p51 = scmp.eq.s32.totalorder %s29, 1
      %p52 = por %p50, %p51
      %p54 = scmp.ne.s32.totalorder %s37, %s53
      %p55 = scmp.eq.s32.totalorder %s29, 0
      %p56 = por %p54, %p55
      %s58 = sadd.s32 %s57, 1
      %p61 = scmp.eq.s32.totalorder %s23, 1
      %p62 = scmp.ne.s32.totalorder %s57, %s59
      %p63 = scmp.eq.s32.totalorder %s23, 0
      %p64 = por %p62, %p63
      %p65 = scmp.ne.s32.totalorder %s57, %s59
      %p66 = scmp.eq.s32.totalorder %s28, 1
      %p67 = por %p65, %p66
      %p68 = scmp.ne.s32.totalorder %s59, %s60
      %p69 = scmp.eq.s32.totalorder %s28, 0
      %p70 = por %p68, %p69
      %p71 = scmp.ne.s32.totalorder %s59, %s60
      %p72 = scmp.eq.s32.totalorder %s29, 1
      %p73 = por %p71, %p72
      %p75 = scmp.ne.s32.totalorder %s60, %s74
      %p76 = scmp.eq.s32.totalorder %s29, 0
      %p77 = por %p75, %p76
      %s79 = sadd.s32 %s78, 1
      %p82 = scmp.eq.s32.totalorder %s23, 1
      %p83 = scmp.ne.s32.totalorder %s78, %s80
      %p84 = scmp.eq.s32.totalorder %s23, 0
      %p85 = por %p83, %p84
      %p86 = scmp.ne.s32.totalorder %s78, %s80
      %p87 = scmp.eq.s32.totalorder %s28, 1
      %p88 = por %p86, %p87
      %p89 = scmp.ne.s32.totalorder %s80, %s81
      %p90 = scmp.eq.s32.totalorder %s28, 0
      %p91 = por %p89, %p90
      %p92 = scmp.ne.s32.totalorder %s80, %s81
      %p93 = scmp.eq.s32.totalorder %s29, 1
      %p94 = por %p92, %p93
      %p96 = scmp.ne.s32.totalorder %s81, %s95
      %p97 = scmp.eq.s32.totalorder %s29, 0
      %p98 = por %p96, %p97
      %s100 = sadd.s32 %s99, 1
      %p103 = scmp.eq.s32.totalorder %s23, 1
      %p104 = scmp.ne.s32.totalorder %s99, %s101
      %p105 = scmp.eq.s32.totalorder %s23, 0
      %p106 = por %p104, %p105
      %p107 = scmp.ne.s32.totalorder %s99, %s101
      %p108 = scmp.eq.s32.totalorder %s28, 1
      %p109 = por %p107, %p108
      %p110 = scmp.ne.s32.totalorder %s101, %s102
      %p111 = scmp.eq.s32.totalorder %s28, 0
      %p112 = por %p110, %p111
      %p113 = scmp.ne.s32.totalorder %s101, %s102
      %p114 = scmp.eq.s32.totalorder %s29, 1
      %p115 = por %p113, %p114
      %p117 = scmp.ne.s32.totalorder %s102, %s116
      %p118 = scmp.eq.s32.totalorder %s29, 0
      %p119 = por %p117, %p118
      %s121 = sadd.s32 %s120, 1
      %p124 = scmp.eq.s32.totalorder %s23, 1
      %p125 = scmp.ne.s32.totalorder %s120, %s122
      %p126 = scmp.eq.s32.totalorder %s23, 0
      %p127 = por %p125, %p126
      %p128 = scmp.ne.s32.totalorder %s120, %s122
      %p129 = scmp.eq.s32.totalorder %s28, 1
      %p130 = por %p128, %p129
      %p131 = scmp.ne.s32.totalorder %s122, %s123
      %p132 = scmp.eq.s32.totalorder %s28, 0
      %p133 = por %p131, %p132
      %p134 = scmp.ne.s32.totalorder %s122, %s123
      %p135 = scmp.eq.s32.totalorder %s29, 1
      %p136 = por %p134, %p135
      %p138 = scmp.ne.s32.totalorder %s123, %s137
      %p139 = scmp.eq.s32.totalorder %s29, 0
      %p140 = por %p138, %p139
      %s142 = sadd.s32 %s141, 1
      %p145 = scmp.eq.s32.totalorder %s23, 1
      %p146 = scmp.ne.s32.totalorder %s141, %s143
      %p147 = scmp.eq.s32.totalorder %s23, 0
      %p148 = por %p146, %p147
      %p149 = scmp.ne.s32.totalorder %s141, %s143
      %p150 = scmp.eq.s32.totalorder %s28, 1
      %p151 = por %p149, %p150
      %p152 = scmp.ne.s32.totalorder %s143, %s144
      %p153 = scmp.eq.s32.totalorder %s28, 0
      %p154 = por %p152, %p153
      %p155 = scmp.ne.s32.totalorder %s143, %s144
      %p156 = scmp.eq.s32.totalorder %s29, 1
      %p157 = por %p155, %p156
      %p159 = scmp.ne.s32.totalorder %s144, %s158
      %p160 = scmp.eq.s32.totalorder %s29, 0
      %p161 = por %p159, %p160
      %s163 = sadd.s32 %s162, 1
      %p166 = scmp.eq.s32.totalorder %s23, 1
      %p167 = scmp.ne.s32.totalorder %s162, %s164
      %p168 = scmp.eq.s32.totalorder %s23, 0
      %p169 = por %p167, %p168
      %p170 = scmp.ne.s32.totalorder %s162, %s164
      %p171 = scmp.eq.s32.totalorder %s28, 1
      %p172 = por %p170, %p171
      %p173 = scmp.ne.s32.totalorder %s164, %s165
      %p174 = scmp.eq.s32.totalorder %s28, 0
      %p175 = por %p173, %p174
      %p176 = scmp.ne.s32.totalorder %s164, %s165
      %p177 = scmp.eq.s32.totalorder %s29, 1
      %p178 = por %p176, %p177
      %p180 = scmp.ne.s32.totalorder %s165, %s179
      %p181 = scmp.eq.s32.totalorder %s29, 0
      %p182 = por %p180, %p181
      %s184 = sadd.s32 %s183, 1
      %p187 = scmp.eq.s32.totalorder %s23, 1
      %p188 = scmp.ne.s32.totalorder %s183, %s185
      %p189 = scmp.eq.s32.totalorder %s23, 0
      %p190 = por %p188, %p189
      %p191 = scmp.ne.s32.totalorder %s183, %s185
      %p192 = scmp.eq.s32.totalorder %s28, 1
      %p193 = por %p191, %p192
      %p194 = scmp.ne.s32.totalorder %s185, %s186
      %p195 = scmp.eq.s32.totalorder %s28, 0
      %p196 = por %p194, %p195
      %p197 = scmp.ne.s32.totalorder %s185, %s186
      %p198 = scmp.eq.s32.totalorder %s29, 1
      %p199 = por %p197, %p198
      %p201 = scmp.ne.s32.totalorder %s186, %s200
      %p202 = scmp.eq.s32.totalorder %s29, 0
      %p203 = por %p201, %p202
      %s205 = sadd.s32 %s204, 1
      %p208 = scmp.eq.s32.totalorder %s23, 1
      %p209 = scmp.ne.s32.totalorder %s204, %s206
      %p210 = scmp.eq.s32.totalorder %s23, 0
      %p211 = por %p209, %p210
      %p212 = scmp.ne.s32.totalorder %s204, %s206
      %p213 = scmp.eq.s32.totalorder %s28, 1
      %p214 = por %p212, %p213
      %p215 = scmp.ne.s32.totalorder %s206, %s207
      %p216 = scmp.eq.s32.totalorder %s28, 0
      %p217 = por %p215, %p216
      %p218 = scmp.ne.s32.totalorder %s206, %s207
      %p219 = scmp.eq.s32.totalorder %s29, 1
      %p220 = por %p218, %p219
      %p222 = scmp.ne.s32.totalorder %s207, %s221
      %p223 = scmp.eq.s32.totalorder %s29, 0
      %p224 = por %p222, %p223
      %s226 = sadd.s32 %s225, 1
      %p229 = scmp.eq.s32.totalorder %s23, 1
      %p230 = scmp.ne.s32.totalorder %s225, %s227
      %p231 = scmp.eq.s32.totalorder %s23, 0
      %p232 = por %p230, %p231
      %p233 = scmp.ne.s32.totalorder %s225, %s227
      %p234 = scmp.eq.s32.totalorder %s28, 1
      %p235 = por %p233, %p234
      %p236 = scmp.ne.s32.totalorder %s227, %s228
      %p237 = scmp.eq.s32.totalorder %s28, 0
      %p238 = por %p236, %p237
      %p239 = scmp.ne.s32.totalorder %s227, %s228
      %p240 = scmp.eq.s32.totalorder %s29, 1
      %p241 = por %p239, %p240
      %p243 = scmp.ne.s32.totalorder %s228, %s242
      %p244 = scmp.eq.s32.totalorder %s29, 0
      %p245 = por %p243, %p244
      %s247 = sadd.s32 %s246, 1
      %p250 = scmp.eq.s32.totalorder %s23, 1
      %p251 = scmp.ne.s32.totalorder %s246, %s248
      %p252 = scmp.eq.s32.totalorder %s23, 0
      %p253 = por %p251, %p252
      %p254 = scmp.ne.s32.totalorder %s246, %s248
      %p255 = scmp.eq.s32.totalorder %s28, 1
      %p256 = por %p254, %p255
      %p257 = scmp.ne.s32.totalorder %s248, %s249
      %p258 = scmp.eq.s32.totalorder %s28, 0
      %p259 = por %p257, %p258
      %p260 = scmp.ne.s32.totalorder %s248, %s249
      %p261 = scmp.eq.s32.totalorder %s29, 1
      %p262 = por %p260, %p261
      %p264 = scmp.ne.s32.totalorder %s249, %s263
      %p265 = scmp.eq.s32.totalorder %s29, 0
      %p266 = por %p264, %p265
      %s268 = sadd.s32 %s267, 1
      %p271 = scmp.eq.s32.totalorder %s23, 1
      %p272 = scmp.ne.s32.totalorder %s267, %s269
      %p273 = scmp.eq.s32.totalorder %s23, 0
      %p274 = por %p272, %p273
      %p275 = scmp.ne.s32.totalorder %s267, %s269
      %p276 = scmp.eq.s32.totalorder %s28, 1
      %p277 = por %p275, %p276
      %p278 = scmp.ne.s32.totalorder %s269, %s270
      %p279 = scmp.eq.s32.totalorder %s28, 0
      %p280 = por %p278, %p279
      %p281 = scmp.ne.s32.totalorder %s269, %s270
      %p282 = scmp.eq.s32.totalorder %s29, 1
      %p283 = por %p281, %p282
      %p285 = scmp.ne.s32.totalorder %s270, %s284
      %p286 = scmp.eq.s32.totalorder %s29, 0
      %p287 = por %p285, %p286
      %s289 = sadd.s32 %s288, 1
      %p292 = scmp.eq.s32.totalorder %s23, 1
      %p293 = scmp.ne.s32.totalorder %s288, %s290
      %p294 = scmp.eq.s32.totalorder %s23, 0
      %p295 = por %p293, %p294
      %p296 = scmp.ne.s32.totalorder %s288, %s290
      %p297 = scmp.eq.s32.totalorder %s28, 1
      %p298 = por %p296, %p297
      %p299 = scmp.ne.s32.totalorder %s290, %s291
      %p300 = scmp.eq.s32.totalorder %s28, 0
      %p301 = por %p299, %p300
      %p302 = scmp.ne.s32.totalorder %s290, %s291
      %p303 = scmp.eq.s32.totalorder %s29, 1
      %p304 = por %p302, %p303
      %p306 = scmp.ne.s32.totalorder %s291, %s305
      %p307 = scmp.eq.s32.totalorder %s29, 0
      %p308 = por %p306, %p307
      %s310 = sadd.s32 %s309, 1
      %p313 = scmp.eq.s32.totalorder %s23, 1
      %p314 = scmp.ne.s32.totalorder %s309, %s311
      %p315 = scmp.eq.s32.totalorder %s23, 0
      %p316 = por %p314, %p315
      %p317 = scmp.ne.s32.totalorder %s309, %s311
      %p318 = scmp.eq.s32.totalorder %s28, 1
      %p319 = por %p317, %p318
      %p320 = scmp.ne.s32.totalorder %s311, %s312
      %p321 = scmp.eq.s32.totalorder %s28, 0
      %p322 = por %p320, %p321
      %p323 = scmp.ne.s32.totalorder %s311, %s312
      %p324 = scmp.eq.s32.totalorder %s29, 1
      %p325 = por %p323, %p324
      %p327 = scmp.ne.s32.totalorder %s312, %s326
      %p328 = scmp.eq.s32.totalorder %s29, 0
      %p329 = por %p327, %p328
      %s330 = ssub.s32 %s23, %s30
      %p331 = scmp.eq.s32.totalorder %s330, 0
      %s333 = sadd.s32 %s332, 1
      %s334 = scalar_select %p331, %s332, %s333
      %p337 = pneg %p331
      %p338 = scmp.eq.s32.totalorder %s23, 1
      %p339 = por %p337, %p338
      %p340 = scmp.ne.s32.totalorder %s332, %s335
      %p341 = scmp.eq.s32.totalorder %s23, 0
      %p342 = por %p340, %p341
      %p343 = scmp.ne.s32.totalorder %s332, %s335
      %p344 = scmp.eq.s32.totalorder %s28, 1
      %p345 = por %p343, %p344
      %p346 = scmp.ne.s32.totalorder %s335, %s336
      %p347 = scmp.eq.s32.totalorder %s28, 0
      %p348 = por %p346, %p347
      %p349 = scmp.ne.s32.totalorder %s335, %s336
      %p350 = scmp.eq.s32.totalorder %s29, 1
      %p351 = por %p349, %p350
      %p353 = scmp.ne.s32.totalorder %s336, %s352
      %p354 = scmp.eq.s32.totalorder %s29, 0
      %p355 = por %p353, %p354
      %p356 = scmp.le.s32.totalorder 1, %s23
      %p357 = scmp.lt.s32.totalorder %s23, 3
      %p358 = pnand %p356, %p357
      %p359 = pneg %p358
      // Predicated region
      $region9: #{_lambda_.1} parent=5 // pred_check
        _
      $region10: #{_lambda_.1} parent=5 // pred_check_branch
        %361 = sbr.rel (%p358) target = $region12
      $region11: #{_lambda_.1} parent=5 // pred_region
        %s362 = ssub.s32 %s23, 1
        // Predicated region
        $region13: #{_lambda_.1} parent=11 // pred_check
          %p363 = pneg %p70
        $region14: #{_lambda_.1} parent=11 // pred_check_branch
          %365 = sbr.rel (%p363) target = $region16
        $region15: #{_lambda_.1} parent=11 // pred_region
          _
        $region16: #{_lambda_.1} parent=11 // pred_fallthru
          _
        // Predicated region
        $region17: #{_lambda_.1} parent=11 // pred_check
          %p366 = pneg %p91
        $region18: #{_lambda_.1} parent=11 // pred_check_branch
          %368 = sbr.rel (%p366) target = $region20
        $region19: #{_lambda_.1} parent=11 // pred_region
          _
        $region20: #{_lambda_.1} parent=11 // pred_fallthru
          _
        // Predicated region
        $region21: #{_lambda_.1} parent=11 // pred_check
          %p369 = pneg %p112
        $region22: #{_lambda_.1} parent=11 // pred_check_branch
          %371 = sbr.rel (%p369) target = $region24
        $region23: #{_lambda_.1} parent=11 // pred_region
          _
        $region24: #{_lambda_.1} parent=11 // pred_fallthru
          _
        // Predicated region
        $region25: #{_lambda_.1} parent=11 // pred_check
          %p372 = pneg %p133
        $region26: #{_lambda_.1} parent=11 // pred_check_branch
          %374 = sbr.rel (%p372) target = $region28
        $region27: #{_lambda_.1} parent=11 // pred_region
          _
        $region28: #{_lambda_.1} parent=11 // pred_fallthru
          _
        // Predicated region
        $region29: #{_lambda_.1} parent=11 // pred_check
          %p375 = pneg %p154
        $region30: #{_lambda_.1} parent=11 // pred_check_branch
          %377 = sbr.rel (%p375) target = $region32
        $region31: #{_lambda_.1} parent=11 // pred_region
          _
        $region32: #{_lambda_.1} parent=11 // pred_fallthru
          _
        // Predicated region
        $region33: #{_lambda_.1} parent=11 // pred_check
          %p378 = pneg %p175
        $region34: #{_lambda_.1} parent=11 // pred_check_branch
          %380 = sbr.rel (%p378) target = $region36
        $region35: #{_lambda_.1} parent=11 // pred_region
          _
        $region36: #{_lambda_.1} parent=11 // pred_fallthru
          _
        // Predicated region
        $region37: #{_lambda_.1} parent=11 // pred_check
          %p381 = pneg %p196
        $region38: #{_lambda_.1} parent=11 // pred_check_branch
          %383 = sbr.rel (%p381) target = $region40
        $region39: #{_lambda_.1} parent=11 // pred_region
          _
        $region40: #{_lambda_.1} parent=11 // pred_fallthru
          _
        // Predicated region
        $region41: #{_lambda_.1} parent=11 // pred_check
          %p384 = pneg %p217
        $region42: #{_lambda_.1} parent=11 // pred_check_branch
          %386 = sbr.rel (%p384) target = $region44
        $region43: #{_lambda_.1} parent=11 // pred_region
          _
        $region44: #{_lambda_.1} parent=11 // pred_fallthru
          _
        // Predicated region
        $region45: #{_lambda_.1} parent=11 // pred_check
          %p387 = pneg %p238
        $region46: #{_lambda_.1} parent=11 // pred_check_branch
          %389 = sbr.rel (%p387) target = $region48
        $region47: #{_lambda_.1} parent=11 // pred_region
          _
        $region48: #{_lambda_.1} parent=11 // pred_fallthru
          _
        // Predicated region
        $region49: #{_lambda_.1} parent=11 // pred_check
          %p390 = pneg %p259
        $region50: #{_lambda_.1} parent=11 // pred_check_branch
          %392 = sbr.rel (%p390) target = $region52
        $region51: #{_lambda_.1} parent=11 // pred_region
          _
        $region52: #{_lambda_.1} parent=11 // pred_fallthru
          _
        // Predicated region
        $region53: #{_lambda_.1} parent=11 // pred_check
          %p393 = pneg %p280
        $region54: #{_lambda_.1} parent=11 // pred_check_branch
          %395 = sbr.rel (%p393) target = $region56
        $region55: #{_lambda_.1} parent=11 // pred_region
          _
        $region56: #{_lambda_.1} parent=11 // pred_fallthru
          _
        // Predicated region
        $region57: #{_lambda_.1} parent=11 // pred_check
          %p396 = pneg %p301
        $region58: #{_lambda_.1} parent=11 // pred_check_branch
          %398 = sbr.rel (%p396) target = $region60
        $region59: #{_lambda_.1} parent=11 // pred_region
          _
        $region60: #{_lambda_.1} parent=11 // pred_fallthru
          _
        // Predicated region
        $region61: #{_lambda_.1} parent=11 // pred_check
          %p399 = pneg %p322
        $region62: #{_lambda_.1} parent=11 // pred_check_branch
          %401 = sbr.rel (%p399) target = $region64
        $region63: #{_lambda_.1} parent=11 // pred_region
          _
        $region64: #{_lambda_.1} parent=11 // pred_fallthru
          _
      $region12: #{_lambda_.1} parent=5 // pred_fallthru
        _
      %p402 = scmp.lt.s32.totalorder %s23, 2
      // Predicated region
      $region65: #{_lambda_.1} parent=5 // pred_check
        %p403 = pneg %p402
      $region66: #{_lambda_.1} parent=5 // pred_check_branch
        %405 = sbr.rel (%p403) target = $region68
      $region67: #{_lambda_.1} parent=5 // pred_region
        // Predicated region
        $region69: #{_lambda_.1} parent=67 // pred_check
          %p406 = pneg %p43
        $region70: #{_lambda_.1} parent=67 // pred_check_branch
          %408 = sbr.rel (%p406) target = $region72
        $region71: #{_lambda_.1} parent=67 // pred_region
          %s409 = sand.u32 %s33, 1
          %s410 = sand.u32 %s33, 1
          %s411 = smul.addr %s410, 64
          %s412 = scalar_lea.vmem [#allocation2], %s411
          %s413 = smul.addr %s23, 8
          %s414 = scalar_lea.vmem %s0, %s413
          // Predicated region
          $region73: #{_lambda_.1} parent=71 // pred_check
            _
          $region74: #{_lambda_.1} parent=71 // pred_check_branch
            %416 = sbr.rel (0) target = $region76
          $region75: #{_lambda_.1} parent=71 // pred_region
            // Predicated region
            $region77: #{_lambda_.1} parent=75 // pred_check
              _
            $region78: #{_lambda_.1} parent=75 // pred_check_branch
              %418 = sbr.rel (0) target = $region80
            $region79: #{_lambda_.1} parent=75 // pred_region
              // Predicated region
              $region92: #{_lambda_.1} parent=79 // pred_check
                _
              $region93: #{_lambda_.1} parent=79 // pred_check_branch
                %447 = sbr.rel (0) target = $region95
              $region94: #{_lambda_.1} parent=79 // pred_region
                loop: start=0, step=1, limit=1
                $region96: #{_lambda_.1} parent=94 // loop_pre_header
                  _
                $region97: #{_lambda_.1} parent=94 // loop_header
                  %s449 = sphi 0, %s453
                  %p450 = scmp.ge.s32.totalorder %s449, 1
                  %s454 = sphi %s414, %s414
                  %s455 = sphi %s412, %s412
                $region98: #{_lambda_.1} parent=94 // loop_header_branch
                  %452 = sbr.rel (%p450) target = $region102
                $region99: #{_lambda_.1} parent=94 // loop_body
                  %v456 = vld [vmem:[%s454] sm:$0xff]
                  %457 = vst [vmem:[%s455] sm:$0xff] %v456
                  %v458 = vld [vmem:[%s454 + $0x10] sm:$0xff]
                  %459 = vst [vmem:[%s455 + $0x8] sm:$0xff] %v458
                  %v460 = vld [vmem:[%s454 + $0x20] sm:$0xff]
                  %461 = vst [vmem:[%s455 + $0x10] sm:$0xff] %v460
                  %v462 = vld [vmem:[%s454 + $0x30] sm:$0xff]
                  %463 = vst [vmem:[%s455 + $0x18] sm:$0xff] %v462
                  %v464 = vld [vmem:[%s454 + $0x40] sm:$0xff]
                  %465 = vst [vmem:[%s455 + $0x20] sm:$0xff] %v464
                  %v466 = vld [vmem:[%s454 + $0x50] sm:$0xff]
                  %467 = vst [vmem:[%s455 + $0x28] sm:$0xff] %v466
                  %v468 = vld [vmem:[%s454 + $0x60] sm:$0xff]
                  %469 = vst [vmem:[%s455 + $0x30] sm:$0xff] %v468
                  %v470 = vld [vmem:[%s454 + $0x70] sm:$0xff]
                  %471 = vst [vmem:[%s455 + $0x38] sm:$0xff] %v470
                $region100: #{_lambda_.1} parent=94 // loop_footer
                  %s453 = sadd.s32 1, %s449
                $region101: #{_lambda_.1} parent=94 // loop_footer_branch
                  %448 = sbr.rel target = $region97
                $region102: #{_lambda_.1} parent=94 // loop_exit
                  _
              $region95: #{_lambda_.1} parent=79 // pred_fallthru
                _
              // Predicated region
              $region103: #{_lambda_.1} parent=79 // pred_check
                _
              $region104: #{_lambda_.1} parent=79 // pred_check_branch
                %473 = sbr.rel target = $region106
              $region105: #{_lambda_.1} parent=79 // pred_region
                _
              $region106: #{_lambda_.1} parent=79 // pred_fallthru
                _
            $region80: #{_lambda_.1} parent=75 // pred_fallthru
              _
            // Predicated region
            $region81: #{_lambda_.1} parent=75 // pred_check
              _
            $region82: #{_lambda_.1} parent=75 // pred_check_branch
              %420 = sbr.rel target = $region84
            $region83: #{_lambda_.1} parent=75 // pred_region
              loop: start=0, step=1, limit=1
              $region85: #{_lambda_.1} parent=83 // loop_pre_header
                _
              $region86: #{_lambda_.1} parent=83 // loop_header
                %s423 = sphi 0, %s427
                %p424 = scmp.ge.s32.totalorder %s423, 1
                %s428 = sphi %s414, %s414
                %s429 = sphi %s412, %s412
              $region87: #{_lambda_.1} parent=83 // loop_header_branch
                %426 = sbr.rel (%p424) target = $region91
              $region88: #{_lambda_.1} parent=83 // loop_body
                %v430 = vld [vmem:[%s428] sm:$0xff]
                %431 = vst [vmem:[%s429] sm:$0xff] %v430
                %v432 = vld [vmem:[%s428 + $0x10] sm:$0xff]
                %433 = vst [vmem:[%s429 + $0x8] sm:$0xff] %v432
                %v434 = vld [vmem:[%s428 + $0x20] sm:$0xff]
                %435 = vst [vmem:[%s429 + $0x10] sm:$0xff] %v434
                %v436 = vld [vmem:[%s428 + $0x30] sm:$0xff]
                %437 = vst [vmem:[%s429 + $0x18] sm:$0xff] %v436
                %v438 = vld [vmem:[%s428 + $0x40] sm:$0xff]
                %439 = vst [vmem:[%s429 + $0x20] sm:$0xff] %v438
                %v440 = vld [vmem:[%s428 + $0x50] sm:$0xff]
                %441 = vst [vmem:[%s429 + $0x28] sm:$0xff] %v440
                %v442 = vld [vmem:[%s428 + $0x60] sm:$0xff]
                %443 = vst [vmem:[%s429 + $0x30] sm:$0xff] %v442
                %v444 = vld [vmem:[%s428 + $0x70] sm:$0xff]
                %445 = vst [vmem:[%s429 + $0x38] sm:$0xff] %v444
              $region89: #{_lambda_.1} parent=83 // loop_footer
                %s427 = sadd.s32 1, %s423
              $region90: #{_lambda_.1} parent=83 // loop_footer_branch
                %422 = sbr.rel target = $region86
              $region91: #{_lambda_.1} parent=83 // loop_exit
                _
            $region84: #{_lambda_.1} parent=75 // pred_fallthru
              _
          $region76: #{_lambda_.1} parent=71 // pred_fallthru
            _
          %474 = vnop
        $region72: #{_lambda_.1} parent=67 // pred_fallthru
          _
      $region68: #{_lambda_.1} parent=5 // pred_fallthru
        _
      %p475 = scmp.le.s32.totalorder 1, %s23
      %p476 = scmp.lt.s32.totalorder %s23, 3
      %p477 = pnand %p475, %p476
      %p478 = pneg %p477
      // Predicated region
      $region107: #{_lambda_.1} parent=5 // pred_check
        _
      $region108: #{_lambda_.1} parent=5 // pred_check_branch
        %480 = sbr.rel (%p477) target = $region110
      $region109: #{_lambda_.1} parent=5 // pred_region
        %s481 = ssub.s32 %s23, 1
        %s482 = sand.u32 %s36, 1
        %s483 = sand.u32 %s36, 1
        %s484 = smul.addr %s483, 64
        %s485 = scalar_lea.vmem [#allocation2], %s484
        // Predicated region
        $region111: #{_lambda_.1} parent=109 // pred_check
          %p486 = pneg %p49
        $region112: #{_lambda_.1} parent=109 // pred_check_branch
          %488 = sbr.rel (%p486) target = $region114
        $region113: #{_lambda_.1} parent=109 // pred_region
          _
        $region114: #{_lambda_.1} parent=109 // pred_fallthru
          _
        %s489 = sand.u32 %s36, 1
        %s490 = sand.u32 %s36, 1
        %s491 = smul.addr %s490, 64
        %s492 = scalar_lea.vmem [#allocation2], %s491
        %p493 = pneg %p49
        %p494 = pneg %p46
        %p495 = pneg %p70
        %p496 = pneg %p67
        %p497 = pneg %p91
        %p498 = pneg %p88
        %p499 = pneg %p112
        %p500 = pneg %p109
        %p501 = pneg %p133
        %p502 = pneg %p130
        %p503 = pneg %p154
        %p504 = pneg %p151
        %p505 = pneg %p175
        %p506 = pneg %p172
        %p507 = pneg %p196
        %p508 = pneg %p193
        %p509 = pneg %p217
        %p510 = pneg %p214
        %p511 = pneg %p238
        %p512 = pneg %p235
        %p513 = pneg %p259
        %p514 = pneg %p256
        %p515 = pneg %p280
        %p516 = pneg %p277
        %p517 = pneg %p301
        %p518 = pneg %p298
        %p519 = pneg %p322
        %p520 = pneg %p319
        %p521 = pneg %p348
        %p522 = pneg %p345
        %s523 = sand.u32 %s335, 1
        %s524 = scalar_lea.sflag [#allocation4], %s523
        %s525 = sand.u32 %s335, 1
        %s526 = smul.addr %s525, 8
        %s527 = scalar_lea.vmem [#allocation3], %s526
        %v528 = vld [vmem:[%s485] sm:$0xff]
        %v529 = vld [vmem:[%s485 + $0x8] sm:$0xff]
        %v530 = vld [vmem:[%s485 + $0x10] sm:$0xff]
        %v531 = vld [vmem:[%s485 + $0x18] sm:$0xff]
        %v532 = vld [vmem:[%s485 + $0x20] sm:$0xff]
        %v533 = vld [vmem:[%s485 + $0x28] sm:$0xff]
        %v534 = vld [vmem:[%s485 + $0x30] sm:$0xff]
        %v535 = vld [vmem:[%s485 + $0x38] sm:$0xff]
        %v536 = vld [vmem:[%s1] sm:$0x7f]
        %v537 = vld [vmem:[%s2] sm:$0x7f]
        %v538 = vld [vmem:[%s3] sm:$0x1]
        %v540 = vlaneseq
        %v541 = vshrl.u32 %v540, 7
        %v542 = vsub.s32 0, %v541
        %v543 = vrot.slane %v538, %v542
        %vm545 = vcmask 56320
        %v547 = vsel %vm545, %v528, 0
        %v550 = vsel %vm545, %v529, 0
        %v553 = vsel %vm545, %v530, 0
        %v556 = vsel %vm545, %v531, 0
        %v559 = vsel %vm545, %v532, 0
        %v562 = vsel %vm545, %v533, 0
        %v565 = vsel %vm545, %v534, 0
        %v568 = vsel %vm545, %v535, 0
        %vm570 = vcmask 1046528
        %v572 = vsel %vm570, %v536, 0
        %574 = vmatprep.subr.mxu0 0.0
        %575 = vmatpush1.msra.mxu0 %v572
        %576 = vmatprep.subr.mxu0 0.0
        %577 = vmatpush1.msra.mxu0 0.0
        %578 = vmatprep.subr.mxu0 0.0
        %579 = vmatpush1.msra.mxu0 0.0
        %580 = vmatprep.subr.mxu0 0.0
        %581 = vmatpush1.msra.mxu0 0.0
        %582 = vmatprep.subr.mxu0 0.0
        %583 = vmatpush1.msra.mxu0 0.0
        %584 = vmatprep.subr.mxu0 0.0
        %585 = vmatpush1.msra.mxu0 0.0
        %586 = vmatprep.subr.mxu0 0.0
        %587 = vmatpush1.msra.mxu0 0.0
        %588 = vmatprep.subr.mxu0 0.0
        %589 = vmatpush1.msra.mxu0 0.0
        %590 = vmatprep.subr.mxu0 0.0
        %591 = vmatpush1.msra.mxu0 0.0
        %592 = vmatprep.subr.mxu0 0.0
        %593 = vmatpush1.msra.mxu0 0.0
        %594 = vmatprep.subr.mxu0 0.0
        %595 = vmatpush1.msra.mxu0 0.0
        %596 = vmatprep.subr.mxu0 0.0
        %597 = vmatpush1.msra.mxu0 0.0
        %598 = vmatprep.subr.mxu0 0.0
        %599 = vmatpush1.msra.mxu0 0.0
        %600 = vmatprep.subr.mxu0 0.0
        %601 = vmatpush1.msra.mxu0 0.0
        %602 = vmatprep.subr.mxu0 0.0
        %603 = vmatpush1.msra.mxu0 0.0
        %604 = vmatprep.subr.mxu0 0.0
        %605 = vmatpush1.msra.mxu0 0.0
        %606 = vmatprep.subr.mxu0 0.0
        %607 = vmatpush1.msra.mxu0 0.0
        %608 = vmatprep.subr.mxu0 0.0
        %609 = vmatpush1.msra.mxu0 0.0
        %610 = vmatprep.subr.mxu0 0.0
        %611 = vmatpush1.msra.mxu0 0.0
        %612 = vmatprep.subr.mxu0 0.0
        %613 = vmatpush1.msra.mxu0 0.0
        %614 = vmatprep.subr.mxu0 0.0
        %615 = vmatpush1.msra.mxu0 0.0
        %616 = vmatprep.subr.mxu0 0.0
        %617 = vmatpush1.msra.mxu0 0.0
        %618 = vmatprep.subr.mxu0 0.0
        %619 = vmatpush1.msra.mxu0 0.0
        %620 = vmatprep.subr.mxu0 0.0
        %621 = vmatpush1.msra.mxu0 0.0
        %622 = vmatprep.subr.mxu0 0.0
        %623 = vmatpush1.msra.mxu0 0.0
        %624 = vmatprep.subr.mxu0 0.0
        %625 = vmatpush1.msra.mxu0 0.0
        %626 = vmatprep.subr.mxu0 0.0
        %627 = vmatpush1.msra.mxu0 0.0
        %628 = vmatprep.subr.mxu0 0.0
        %629 = vmatpush1.msra.mxu0 0.0
        %630 = vmatprep.subr.mxu0 0.0
        %631 = vmatpush1.msra.mxu0 0.0
        %632 = vmatprep.subr.mxu0 0.0
        %633 = vmatpush1.msra.mxu0 0.0
        %634 = vmatprep.subr.mxu0 0.0
        %635 = vmatpush1.msra.mxu0 0.0
        %636 = vmatprep.subr.mxu0 0.0
        %637 = vmatpush1.msra.mxu0 0.0
        %638 = vmatprep.mubr.f32.mxu0 0.0
        %639 = vmatmul.mubr.f32.gmra.mrb[0].mxu0 %v547
        %v640 = vpop.f32.mrb[0].mxu0
        %v641 = vadd.f32 %v543, %v640
        %v642 = vpop.f32.mrb[0].mxu0
        %643 = vmatprep.mubr.f32.mxu0 0.0
        %644 = vmatmul.mubr.f32.gmra.mrb[0].mxu0 %v550
        %v645 = vpop.f32.mrb[0].mxu0
        %v646 = vadd.f32 %v543, %v645
        %v647 = vpop.f32.mrb[0].mxu0
        %648 = vmatprep.mubr.f32.mxu0 0.0
        %649 = vmatmul.mubr.f32.gmra.mrb[0].mxu0 %v553
        %v650 = vpop.f32.mrb[0].mxu0
        %v651 = vadd.f32 %v543, %v650
        %v652 = vpop.f32.mrb[0].mxu0
        %653 = vmatprep.mubr.f32.mxu0 0.0
        %654 = vmatmul.mubr.f32.gmra.mrb[0].mxu0 %v556
        %v655 = vpop.f32.mrb[0].mxu0
        %v656 = vadd.f32 %v543, %v655
        %v657 = vpop.f32.mrb[0].mxu0
        %658 = vmatprep.mubr.f32.mxu0 0.0
        %659 = vmatmul.mubr.f32.gmra.mrb[0].mxu0 %v559
        %v660 = vpop.f32.mrb[0].mxu0
        %v661 = vadd.f32 %v543, %v660
        %v662 = vpop.f32.mrb[0].mxu0
        %663 = vmatprep.mubr.f32.mxu0 0.0
        %664 = vmatmul.mubr.f32.gmra.mrb[0].mxu0 %v562
        %v665 = vpop.f32.mrb[0].mxu0
        %v666 = vadd.f32 %v543, %v665
        %v667 = vpop.f32.mrb[0].mxu0
        %668 = vmatprep.mubr.f32.mxu0 0.0
        %669 = vmatmul.mubr.f32.gmra.mrb[0].mxu0 %v565
        %v670 = vpop.f32.mrb[0].mxu0
        %v671 = vadd.f32 %v543, %v670
        %v672 = vpop.f32.mrb[0].mxu0
        %673 = vmatprep.mubr.f32.mxu0 0.0
        %674 = vmatmul.mubr.f32.gmra.mrb[0].mxu0 %v568
        %v675 = vpop.f32.mrb[0].mxu0
        %v676 = vadd.f32 %v543, %v675
        %v677 = vpop.f32.mrb[0].mxu0
        %678 = vdwg.mxu0
        %v680 = vsel %vm570, %v537, 0
        %682 = vmatprep.subr.mxu0 0.0
        %683 = vmatpush1.msra.mxu0 %v680
        %684 = vmatprep.subr.mxu0 0.0
        %685 = vmatpush1.msra.mxu0 0.0
        %686 = vmatprep.subr.mxu0 0.0
        %687 = vmatpush1.msra.mxu0 0.0
        %688 = vmatprep.subr.mxu0 0.0
        %689 = vmatpush1.msra.mxu0 0.0
        %690 = vmatprep.subr.mxu0 0.0
        %691 = vmatpush1.msra.mxu0 0.0
        %692 = vmatprep.subr.mxu0 0.0
        %693 = vmatpush1.msra.mxu0 0.0
        %694 = vmatprep.subr.mxu0 0.0
        %695 = vmatpush1.msra.mxu0 0.0
        %696 = vmatprep.subr.mxu0 0.0
        %697 = vmatpush1.msra.mxu0 0.0
        %698 = vmatprep.subr.mxu0 0.0
        %699 = vmatpush1.msra.mxu0 0.0
        %700 = vmatprep.subr.mxu0 0.0
        %701 = vmatpush1.msra.mxu0 0.0
        %702 = vmatprep.subr.mxu0 0.0
        %703 = vmatpush1.msra.mxu0 0.0
        %704 = vmatprep.subr.mxu0 0.0
        %705 = vmatpush1.msra.mxu0 0.0
        %706 = vmatprep.subr.mxu0 0.0
        %707 = vmatpush1.msra.mxu0 0.0
        %708 = vmatprep.subr.mxu0 0.0
        %709 = vmatpush1.msra.mxu0 0.0
        %710 = vmatprep.subr.mxu0 0.0
        %711 = vmatpush1.msra.mxu0 0.0
        %712 = vmatprep.subr.mxu0 0.0
        %713 = vmatpush1.msra.mxu0 0.0
        %714 = vmatprep.subr.mxu0 0.0
        %715 = vmatpush1.msra.mxu0 0.0
        %716 = vmatprep.subr.mxu0 0.0
        %717 = vmatpush1.msra.mxu0 0.0
        %718 = vmatprep.subr.mxu0 0.0
        %719 = vmatpush1.msra.mxu0 0.0
        %720 = vmatprep.subr.mxu0 0.0
        %721 = vmatpush1.msra.mxu0 0.0
        %722 = vmatprep.subr.mxu0 0.0
        %723 = vmatpush1.msra.mxu0 0.0
        %724 = vmatprep.subr.mxu0 0.0
        %725 = vmatpush1.msra.mxu0 0.0
        %726 = vmatprep.subr.mxu0 0.0
        %727 = vmatpush1.msra.mxu0 0.0
        %728 = vmatprep.subr.mxu0 0.0
        %729 = vmatpush1.msra.mxu0 0.0
        %730 = vmatprep.subr.mxu0 0.0
        %731 = vmatpush1.msra.mxu0 0.0
        %732 = vmatprep.subr.mxu0 0.0
        %733 = vmatpush1.msra.mxu0 0.0
        %734 = vmatprep.subr.mxu0 0.0
        %735 = vmatpush1.msra.mxu0 0.0
        %736 = vmatprep.subr.mxu0 0.0
        %737 = vmatpush1.msra.mxu0 0.0
        %738 = vmatprep.subr.mxu0 0.0
        %739 = vmatpush1.msra.mxu0 0.0
        %740 = vmatprep.subr.mxu0 0.0
        %741 = vmatpush1.msra.mxu0 0.0
        %742 = vmatprep.subr.mxu0 0.0
        %743 = vmatpush1.msra.mxu0 0.0
        %744 = vmatprep.subr.mxu0 0.0
        %745 = vmatpush1.msra.mxu0 0.0
        %746 = vmatprep.mubr.f32.mxu0 0.0
        %747 = vmatmul.mubr.f32.gmra.mrb[0].mxu0 %v547
        %v748 = vpop.f32.mrb[0].mxu0
        %v749 = vadd.f32 0.0, %v748
        %v750 = vpop.f32.mrb[0].mxu0
        %751 = vmatprep.mubr.f32.mxu0 0.0
        %752 = vmatmul.mubr.f32.gmra.mrb[0].mxu0 %v550
        %v753 = vpop.f32.mrb[0].mxu0
        %v754 = vadd.f32 0.0, %v753
        %v755 = vpop.f32.mrb[0].mxu0
        %756 = vmatprep.mubr.f32.mxu0 0.0
        %757 = vmatmul.mubr.f32.gmra.mrb[0].mxu0 %v553
        %v758 = vpop.f32.mrb[0].mxu0
        %v759 = vadd.f32 0.0, %v758
        %v760 = vpop.f32.mrb[0].mxu0
        %761 = vmatprep.mubr.f32.mxu0 0.0
        %762 = vmatmul.mubr.f32.gmra.mrb[0].mxu0 %v556
        %v763 = vpop.f32.mrb[0].mxu0
        %v764 = vadd.f32 0.0, %v763
        %v765 = vpop.f32.mrb[0].mxu0
        %766 = vmatprep.mubr.f32.mxu0 0.0
        %767 = vmatmul.mubr.f32.gmra.mrb[0].mxu0 %v559
        %v768 = vpop.f32.mrb[0].mxu0
        %v769 = vadd.f32 0.0, %v768
        %v770 = vpop.f32.mrb[0].mxu0
        %771 = vmatprep.mubr.f32.mxu0 0.0
        %772 = vmatmul.mubr.f32.gmra.mrb[0].mxu0 %v562
        %v773 = vpop.f32.mrb[0].mxu0
        %v774 = vadd.f32 0.0, %v773
        %v775 = vpop.f32.mrb[0].mxu0
        %776 = vmatprep.mubr.f32.mxu0 0.0
        %777 = vmatmul.mubr.f32.gmra.mrb[0].mxu0 %v565
        %v778 = vpop.f32.mrb[0].mxu0
        %v779 = vadd.f32 0.0, %v778
        %v780 = vpop.f32.mrb[0].mxu0
        %781 = vmatprep.mubr.f32.mxu0 0.0
        %782 = vmatmul.mubr.f32.gmra.mrb[0].mxu0 %v568
        %v783 = vpop.f32.mrb[0].mxu0
        %v784 = vadd.f32 0.0, %v783
        %v785 = vpop.f32.mrb[0].mxu0
        %786 = vdwg.mxu0
        %v787 = vmax.f32 %v784, %v754
        %v788 = vadd.f32 %v641, %v787
        %v789 = vmax.f32 %v749, %v759
        %v790 = vadd.f32 %v646, %v789
        %v791 = vmax.f32 %v754, %v764
        %v792 = vadd.f32 %v651, %v791
        %v793 = vmax.f32 %v759, %v769
        %v794 = vadd.f32 %v656, %v793
        %v795 = vmax.f32 %v764, %v774
        %v796 = vadd.f32 %v661, %v795
        %v797 = vmax.f32 %v769, %v779
        %v798 = vadd.f32 %v666, %v797
        %v799 = vmax.f32 %v774, %v784
        %v800 = vadd.f32 %v671, %v799
        %v801 = vmax.f32 %v779, %v749
        %v802 = vadd.f32 %v676, %v801
        %v803 = vmax.f32 %v788, 0.0
        %v804 = vmax.f32 %v790, 0.0
        %v805 = vmax.f32 %v792, 0.0
        %v806 = vmax.f32 %v794, 0.0
        %v807 = vmax.f32 %v796, 0.0
        %v808 = vmax.f32 %v798, 0.0
        %v809 = vmax.f32 %v800, 0.0
        %v810 = vmax.f32 %v802, 0.0
        %v811 = vld [vmem:[%s4] sm:$0x7f]
        %v812 = vld [vmem:[%s5] sm:$0x7f]
        %v813 = vld [vmem:[%s6] sm:$0x1]
        %v815 = vlaneseq
        %v816 = vshrl.u32 %v815, 7
        %v817 = vsub.s32 0, %v816
        %v818 = vrot.slane %v813, %v817
        %v821 = vsel %vm545, %v803, 0
        %v824 = vsel %vm545, %v804, 0
        %v827 = vsel %vm545, %v805, 0
        %v830 = vsel %vm545, %v806, 0
        %v833 = vsel %vm545, %v807, 0
        %v836 = vsel %vm545, %v808, 0
        %v839 = vsel %vm545, %v809, 0
        %v842 = vsel %vm545, %v810, 0
        %v845 = vsel %vm570, %v811, 0
        %847 = vmatprep.subr.mxu0 0.0
        %848 = vmatpush1.msra.mxu0 %v845
        %849 = vmatprep.subr.mxu0 0.0
        %850 = vmatpush1.msra.mxu0 0.0
        %851 = vmatprep.subr.mxu0 0.0
        %852 = vmatpush1.msra.mxu0 0.0
        %853 = vmatprep.subr.mxu0 0.0
        %854 = vmatpush1.msra.mxu0 0.0
        %855 = vmatprep.subr.mxu0 0.0
        %856 = vmatpush1.msra.mxu0 0.0
        %857 = vmatprep.subr.mxu0 0.0
        %858 = vmatpush1.msra.mxu0 0.0
        %859 = vmatprep.subr.mxu0 0.0
        %860 = vmatpush1.msra.mxu0 0.0
        %861 = vmatprep.subr.mxu0 0.0
        %862 = vmatpush1.msra.mxu0 0.0
        %863 = vmatprep.subr.mxu0 0.0
        %864 = vmatpush1.msra.mxu0 0.0
        %865 = vmatprep.subr.mxu0 0.0
        %866 = vmatpush1.msra.mxu0 0.0
        %867 = vmatprep.subr.mxu0 0.0
        %868 = vmatpush1.msra.mxu0 0.0
        %869 = vmatprep.subr.mxu0 0.0
        %870 = vmatpush1.msra.mxu0 0.0
        %871 = vmatprep.subr.mxu0 0.0
        %872 = vmatpush1.msra.mxu0 0.0
        %873 = vmatprep.subr.mxu0 0.0
        %874 = vmatpush1.msra.mxu0 0.0
        %875 = vmatprep.subr.mxu0 0.0
        %876 = vmatpush1.msra.mxu0 0.0
        %877 = vmatprep.subr.mxu0 0.0
        %878 = vmatpush1.msra.mxu0 0.0
        %879 = vmatprep.subr.mxu0 0.0
        %880 = vmatpush1.msra.mxu0 0.0
        %881 = vmatprep.subr.mxu0 0.0
        %882 = vmatpush1.msra.mxu0 0.0
        %883 = vmatprep.subr.mxu0 0.0
        %884 = vmatpush1.msra.mxu0 0.0
        %885 = vmatprep.subr.mxu0 0.0
        %886 = vmatpush1.msra.mxu0 0.0
        %887 = vmatprep.subr.mxu0 0.0
        %888 = vmatpush1.msra.mxu0 0.0
        %889 = vmatprep.subr.mxu0 0.0
        %890 = vmatpush1.msra.mxu0 0.0
        %891 = vmatprep.subr.mxu0 0.0
        %892 = vmatpush1.msra.mxu0 0.0
        %893 = vmatprep.subr.mxu0 0.0
        %894 = vmatpush1.msra.mxu0 0.0
        %895 = vmatprep.subr.mxu0 0.0
        %896 = vmatpush1.msra.mxu0 0.0
        %897 = vmatprep.subr.mxu0 0.0
        %898 = vmatpush1.msra.mxu0 0.0
        %899 = vmatprep.subr.mxu0 0.0
        %900 = vmatpush1.msra.mxu0 0.0
        %901 = vmatprep.subr.mxu0 0.0
        %902 = vmatpush1.msra.mxu0 0.0
        %903 = vmatprep.subr.mxu0 0.0
        %904 = vmatpush1.msra.mxu0 0.0
        %905 = vmatprep.subr.mxu0 0.0
        %906 = vmatpush1.msra.mxu0 0.0
        %907 = vmatprep.subr.mxu0 0.0
        %908 = vmatpush1.msra.mxu0 0.0
        %909 = vmatprep.subr.mxu0 0.0
        %910 = vmatpush1.msra.mxu0 0.0
        %911 = vmatprep.mubr.f32.mxu0 0.0
        %912 = vmatmul.mubr.f32.gmra.mrb[0].mxu0 %v821
        %v913 = vpop.f32.mrb[0].mxu0
        %v914 = vadd.f32 %v818, %v913
        %v915 = vpop.f32.mrb[0].mxu0
        %916 = vmatprep.mubr.f32.mxu0 0.0
        %917 = vmatmul.mubr.f32.gmra.mrb[0].mxu0 %v824
        %v918 = vpop.f32.mrb[0].mxu0
        %v919 = vadd.f32 %v818, %v918
        %v920 = vpop.f32.mrb[0].mxu0
        %921 = vmatprep.mubr.f32.mxu0 0.0
        %922 = vmatmul.mubr.f32.gmra.mrb[0].mxu0 %v827
        %v923 = vpop.f32.mrb[0].mxu0
        %v924 = vadd.f32 %v818, %v923
        %v925 = vpop.f32.mrb[0].mxu0
        %926 = vmatprep.mubr.f32.mxu0 0.0
        %927 = vmatmul.mubr.f32.gmra.mrb[0].mxu0 %v830
        %v928 = vpop.f32.mrb[0].mxu0
        %v929 = vadd.f32 %v818, %v928
        %v930 = vpop.f32.mrb[0].mxu0
        %931 = vmatprep.mubr.f32.mxu0 0.0
        %932 = vmatmul.mubr.f32.gmra.mrb[0].mxu0 %v833
        %v933 = vpop.f32.mrb[0].mxu0
        %v934 = vadd.f32 %v818, %v933
        %v935 = vpop.f32.mrb[0].mxu0
        %936 = vmatprep.mubr.f32.mxu0 0.0
        %937 = vmatmul.mubr.f32.gmra.mrb[0].mxu0 %v836
        %v938 = vpop.f32.mrb[0].mxu0
        %v939 = vadd.f32 %v818, %v938
        %v940 = vpop.f32.mrb[0].mxu0
        %941 = vmatprep.mubr.f32.mxu0 0.0
        %942 = vmatmul.mubr.f32.gmra.mrb[0].mxu0 %v839
        %v943 = vpop.f32.mrb[0].mxu0
        %v944 = vadd.f32 %v818, %v943
        %v945 = vpop.f32.mrb[0].mxu0
        %946 = vmatprep.mubr.f32.mxu0 0.0
        %947 = vmatmul.mubr.f32.gmra.mrb[0].mxu0 %v842
        %v948 = vpop.f32.mrb[0].mxu0
        %v949 = vadd.f32 %v818, %v948
        %v950 = vpop.f32.mrb[0].mxu0
        %951 = vdwg.mxu0
        %v953 = vsel %vm570, %v812, 0
        %955 = vmatprep.subr.mxu0 0.0
        %956 = vmatpush1.msra.mxu0 %v953
        %957 = vmatprep.subr.mxu0 0.0
        %958 = vmatpush1.msra.mxu0 0.0
        %959 = vmatprep.subr.mxu0 0.0
        %960 = vmatpush1.msra.mxu0 0.0
        %961 = vmatprep.subr.mxu0 0.0
        %962 = vmatpush1.msra.mxu0 0.0
        %963 = vmatprep.subr.mxu0 0.0
        %964 = vmatpush1.msra.mxu0 0.0
        %965 = vmatprep.subr.mxu0 0.0
        %966 = vmatpush1.msra.mxu0 0.0
        %967 = vmatprep.subr.mxu0 0.0
        %968 = vmatpush1.msra.mxu0 0.0
        %969 = vmatprep.subr.mxu0 0.0
        %970 = vmatpush1.msra.mxu0 0.0
        %971 = vmatprep.subr.mxu0 0.0
        %972 = vmatpush1.msra.mxu0 0.0
        %973 = vmatprep.subr.mxu0 0.0
        %974 = vmatpush1.msra.mxu0 0.0
        %975 = vmatprep.subr.mxu0 0.0
        %976 = vmatpush1.msra.mxu0 0.0
        %977 = vmatprep.subr.mxu0 0.0
        %978 = vmatpush1.msra.mxu0 0.0
        %979 = vmatprep.subr.mxu0 0.0
        %980 = vmatpush1.msra.mxu0 0.0
        %981 = vmatprep.subr.mxu0 0.0
        %982 = vmatpush1.msra.mxu0 0.0
        %983 = vmatprep.subr.mxu0 0.0
        %984 = vmatpush1.msra.mxu0 0.0
        %985 = vmatprep.subr.mxu0 0.0
        %986 = vmatpush1.msra.mxu0 0.0
        %987 = vmatprep.subr.mxu0 0.0
        %988 = vmatpush1.msra.mxu0 0.0
        %989 = vmatprep.subr.mxu0 0.0
        %990 = vmatpush1.msra.mxu0 0.0
        %991 = vmatprep.subr.mxu0 0.0
        %992 = vmatpush1.msra.mxu0 0.0
        %993 = vmatprep.subr.mxu0 0.0
        %994 = vmatpush1.msra.mxu0 0.0
        %995 = vmatprep.subr.mxu0 0.0
        %996 = vmatpush1.msra.mxu0 0.0
        %997 = vmatprep.subr.mxu0 0.0
        %998 = vmatpush1.msra.mxu0 0.0
        %999 = vmatprep.subr.mxu0 0.0
        %1000 = vmatpush1.msra.mxu0 0.0
        %1001 = vmatprep.subr.mxu0 0.0
        %1002 = vmatpush1.msra.mxu0 0.0
        %1003 = vmatprep.subr.mxu0 0.0
        %1004 = vmatpush1.msra.mxu0 0.0
        %1005 = vmatprep.subr.mxu0 0.0
        %1006 = vmatpush1.msra.mxu0 0.0
        %1007 = vmatprep.subr.mxu0 0.0
        %1008 = vmatpush1.msra.mxu0 0.0
        %1009 = vmatprep.subr.mxu0 0.0
        %1010 = vmatpush1.msra.mxu0 0.0
        %1011 = vmatprep.subr.mxu0 0.0
        %1012 = vmatpush1.msra.mxu0 0.0
        %1013 = vmatprep.subr.mxu0 0.0
        %1014 = vmatpush1.msra.mxu0 0.0
        %1015 = vmatprep.subr.mxu0 0.0
        %1016 = vmatpush1.msra.mxu0 0.0
        %1017 = vmatprep.subr.mxu0 0.0
        %1018 = vmatpush1.msra.mxu0 0.0
        %1019 = vmatprep.mubr.f32.mxu0 0.0
        %1020 = vmatmul.mubr.f32.gmra.mrb[0].mxu0 %v821
        %v1021 = vpop.f32.mrb[0].mxu0
        %v1022 = vadd.f32 0.0, %v1021
        %v1023 = vpop.f32.mrb[0].mxu0
        %1024 = vmatprep.mubr.f32.mxu0 0.0
        %1025 = vmatmul.mubr.f32.gmra.mrb[0].mxu0 %v824
        %v1026 = vpop.f32.mrb[0].mxu0
        %v1027 = vadd.f32 0.0, %v1026
        %v1028 = vpop.f32.mrb[0].mxu0
        %1029 = vmatprep.mubr.f32.mxu0 0.0
        %1030 = vmatmul.mubr.f32.gmra.mrb[0].mxu0 %v827
        %v1031 = vpop.f32.mrb[0].mxu0
        %v1032 = vadd.f32 0.0, %v1031
        %v1033 = vpop.f32.mrb[0].mxu0
        %1034 = vmatprep.mubr.f32.mxu0 0.0
        %1035 = vmatmul.mubr.f32.gmra.mrb[0].mxu0 %v830
        %v1036 = vpop.f32.mrb[0].mxu0
        %v1037 = vadd.f32 0.0, %v1036
        %v1038 = vpop.f32.mrb[0].mxu0
        %1039 = vmatprep.mubr.f32.mxu0 0.0
        %1040 = vmatmul.mubr.f32.gmra.mrb[0].mxu0 %v833
        %v1041 = vpop.f32.mrb[0].mxu0
        %v1042 = vadd.f32 0.0, %v1041
        %v1043 = vpop.f32.mrb[0].mxu0
        %1044 = vmatprep.mubr.f32.mxu0 0.0
        %1045 = vmatmul.mubr.f32.gmra.mrb[0].mxu0 %v836
        %v1046 = vpop.f32.mrb[0].mxu0
        %v1047 = vadd.f32 0.0, %v1046
        %v1048 = vpop.f32.mrb[0].mxu0
        %1049 = vmatprep.mubr.f32.mxu0 0.0
        %1050 = vmatmul.mubr.f32.gmra.mrb[0].mxu0 %v839
        %v1051 = vpop.f32.mrb[0].mxu0
        %v1052 = vadd.f32 0.0, %v1051
        %v1053 = vpop.f32.mrb[0].mxu0
        %1054 = vmatprep.mubr.f32.mxu0 0.0
        %1055 = vmatmul.mubr.f32.gmra.mrb[0].mxu0 %v842
        %v1056 = vpop.f32.mrb[0].mxu0
        %v1057 = vadd.f32 0.0, %v1056
        %v1058 = vpop.f32.mrb[0].mxu0
        %1059 = vdwg.mxu0
        %v1060 = vmax.f32 %v1057, %v1027
        %v1061 = vadd.f32 %v914, %v1060
        %v1062 = vmax.f32 %v1022, %v1032
        %v1063 = vadd.f32 %v919, %v1062
        %v1064 = vmax.f32 %v1027, %v1037
        %v1065 = vadd.f32 %v924, %v1064
        %v1066 = vmax.f32 %v1032, %v1042
        %v1067 = vadd.f32 %v929, %v1066
        %v1068 = vmax.f32 %v1037, %v1047
        %v1069 = vadd.f32 %v934, %v1068
        %v1070 = vmax.f32 %v1042, %v1052
        %v1071 = vadd.f32 %v939, %v1070
        %v1072 = vmax.f32 %v1047, %v1057
        %v1073 = vadd.f32 %v944, %v1072
        %v1074 = vmax.f32 %v1052, %v1022
        %v1075 = vadd.f32 %v949, %v1074
        %v1076 = vadd.f32 %v1061, %v803
        %v1077 = vadd.f32 %v1063, %v804
        %v1078 = vadd.f32 %v1065, %v805
        %v1079 = vadd.f32 %v1067, %v806
        %v1080 = vadd.f32 %v1069, %v807
        %v1081 = vadd.f32 %v1071, %v808
        %v1082 = vadd.f32 %v1073, %v809
        %v1083 = vadd.f32 %v1075, %v810
        %v1084 = vmax.f32 %v1076, 0.0
        %v1085 = vmax.f32 %v1077, 0.0
        %v1086 = vmax.f32 %v1078, 0.0
        %v1087 = vmax.f32 %v1079, 0.0
        %v1088 = vmax.f32 %v1080, 0.0
        %v1089 = vmax.f32 %v1081, 0.0
        %v1090 = vmax.f32 %v1082, 0.0
        %v1091 = vmax.f32 %v1083, 0.0
        %v1092 = vld [vmem:[%s7] sm:$0x7f]
        %v1093 = vld [vmem:[%s8] sm:$0x7f]
        %v1094 = vld [vmem:[%s9] sm:$0x1]
        %v1096 = vlaneseq
        %v1097 = vshrl.u32 %v1096, 7
        %v1098 = vsub.s32 0, %v1097
        %v1099 = vrot.slane %v1094, %v1098
        %v1102 = vsel %vm545, %v1084, 0
        %v1105 = vsel %vm545, %v1085, 0
        %v1108 = vsel %vm545, %v1086, 0
        %v1111 = vsel %vm545, %v1087, 0
        %v1114 = vsel %vm545, %v1088, 0
        %v1117 = vsel %vm545, %v1089, 0
        %v1120 = vsel %vm545, %v1090, 0
        %v1123 = vsel %vm545, %v1091, 0
        %v1126 = vsel %vm570, %v1092, 0
        %1128 = vmatprep.subr.mxu0 0.0
        %1129 = vmatpush1.msra.mxu0 %v1126
        %1130 = vmatprep.subr.mxu0 0.0
        %1131 = vmatpush1.msra.mxu0 0.0
        %1132 = vmatprep.subr.mxu0 0.0
        %1133 = vmatpush1.msra.mxu0 0.0
        %1134 = vmatprep.subr.mxu0 0.0
        %1135 = vmatpush1.msra.mxu0 0.0
        %1136 = vmatprep.subr.mxu0 0.0
        %1137 = vmatpush1.msra.mxu0 0.0
        %1138 = vmatprep.subr.mxu0 0.0
        %1139 = vmatpush1.msra.mxu0 0.0
        %1140 = vmatprep.subr.mxu0 0.0
        %1141 = vmatpush1.msra.mxu0 0.0
        %1142 = vmatprep.subr.mxu0 0.0
        %1143 = vmatpush1.msra.mxu0 0.0
        %1144 = vmatprep.subr.mxu0 0.0
        %1145 = vmatpush1.msra.mxu0 0.0
        %1146 = vmatprep.subr.mxu0 0.0
        %1147 = vmatpush1.msra.mxu0 0.0
        %1148 = vmatprep.subr.mxu0 0.0
        %1149 = vmatpush1.msra.mxu0 0.0
        %1150 = vmatprep.subr.mxu0 0.0
        %1151 = vmatpush1.msra.mxu0 0.0
        %1152 = vmatprep.subr.mxu0 0.0
        %1153 = vmatpush1.msra.mxu0 0.0
        %1154 = vmatprep.subr.mxu0 0.0
        %1155 = vmatpush1.msra.mxu0 0.0
        %1156 = vmatprep.subr.mxu0 0.0
        %1157 = vmatpush1.msra.mxu0 0.0
        %1158 = vmatprep.subr.mxu0 0.0
        %1159 = vmatpush1.msra.mxu0 0.0
        %1160 = vmatprep.subr.mxu0 0.0
        %1161 = vmatpush1.msra.mxu0 0.0
        %1162 = vmatprep.subr.mxu0 0.0
        %1163 = vmatpush1.msra.mxu0 0.0
        %1164 = vmatprep.subr.mxu0 0.0
        %1165 = vmatpush1.msra.mxu0 0.0
        %1166 = vmatprep.subr.mxu0 0.0
        %1167 = vmatpush1.msra.mxu0 0.0
        %1168 = vmatprep.subr.mxu0 0.0
        %1169 = vmatpush1.msra.mxu0 0.0
        %1170 = vmatprep.subr.mxu0 0.0
        %1171 = vmatpush1.msra.mxu0 0.0
        %1172 = vmatprep.subr.mxu0 0.0
        %1173 = vmatpush1.msra.mxu0 0.0
        %1174 = vmatprep.subr.mxu0 0.0
        %1175 = vmatpush1.msra.mxu0 0.0
        %1176 = vmatprep.subr.mxu0 0.0
        %1177 = vmatpush1.msra.mxu0 0.0
        %1178 = vmatprep.subr.mxu0 0.0
        %1179 = vmatpush1.msra.mxu0 0.0
        %1180 = vmatprep.subr.mxu0 0.0
        %1181 = vmatpush1.msra.mxu0 0.0
        %1182 = vmatprep.subr.mxu0 0.0
        %1183 = vmatpush1.msra.mxu0 0.0
        %1184 = vmatprep.subr.mxu0 0.0
        %1185 = vmatpush1.msra.mxu0 0.0
        %1186 = vmatprep.subr.mxu0 0.0
        %1187 = vmatpush1.msra.mxu0 0.0
        %1188 = vmatprep.subr.mxu0 0.0
        %1189 = vmatpush1.msra.mxu0 0.0
        %1190 = vmatprep.subr.mxu0 0.0
        %1191 = vmatpush1.msra.mxu0 0.0
        %1192 = vmatprep.mubr.f32.mxu0 0.0
        %1193 = vmatmul.mubr.f32.gmra.mrb[0].mxu0 %v1102
        %v1194 = vpop.f32.mrb[0].mxu0
        %v1195 = vadd.f32 %v1099, %v1194
        %v1196 = vpop.f32.mrb[0].mxu0
        %1197 = vmatprep.mubr.f32.mxu0 0.0
        %1198 = vmatmul.mubr.f32.gmra.mrb[0].mxu0 %v1105
        %v1199 = vpop.f32.mrb[0].mxu0
        %v1200 = vadd.f32 %v1099, %v1199
        %v1201 = vpop.f32.mrb[0].mxu0
        %1202 = vmatprep.mubr.f32.mxu0 0.0
        %1203 = vmatmul.mubr.f32.gmra.mrb[0].mxu0 %v1108
        %v1204 = vpop.f32.mrb[0].mxu0
        %v1205 = vadd.f32 %v1099, %v1204
        %v1206 = vpop.f32.mrb[0].mxu0
        %1207 = vmatprep.mubr.f32.mxu0 0.0
        %1208 = vmatmul.mubr.f32.gmra.mrb[0].mxu0 %v1111
        %v1209 = vpop.f32.mrb[0].mxu0
        %v1210 = vadd.f32 %v1099, %v1209
        %v1211 = vpop.f32.mrb[0].mxu0
        %1212 = vmatprep.mubr.f32.mxu0 0.0
        %1213 = vmatmul.mubr.f32.gmra.mrb[0].mxu0 %v1114
        %v1214 = vpop.f32.mrb[0].mxu0
        %v1215 = vadd.f32 %v1099, %v1214
        %v1216 = vpop.f32.mrb[0].mxu0
        %1217 = vmatprep.mubr.f32.mxu0 0.0
        %1218 = vmatmul.mubr.f32.gmra.mrb[0].mxu0 %v1117
        %v1219 = vpop.f32.mrb[0].mxu0
        %v1220 = vadd.f32 %v1099, %v1219
        %v1221 = vpop.f32.mrb[0].mxu0
        %1222 = vmatprep.mubr.f32.mxu0 0.0
        %1223 = vmatmul.mubr.f32.gmra.mrb[0].mxu0 %v1120
        %v1224 = vpop.f32.mrb[0].mxu0
        %v1225 = vadd.f32 %v1099, %v1224
        %v1226 = vpop.f32.mrb[0].mxu0
        %1227 = vmatprep.mubr.f32.mxu0 0.0
        %1228 = vmatmul.mubr.f32.gmra.mrb[0].mxu0 %v1123
        %v1229 = vpop.f32.mrb[0].mxu0
        %v1230 = vadd.f32 %v1099, %v1229
        %v1231 = vpop.f32.mrb[0].mxu0
        %1232 = vdwg.mxu0
        %v1234 = vsel %vm570, %v1093, 0
        %1236 = vmatprep.subr.mxu0 0.0
        %1237 = vmatpush1.msra.mxu0 %v1234
        %1238 = vmatprep.subr.mxu0 0.0
        %1239 = vmatpush1.msra.mxu0 0.0
        %1240 = vmatprep.subr.mxu0 0.0
        %1241 = vmatpush1.msra.mxu0 0.0
        %1242 = vmatprep.subr.mxu0 0.0
        %1243 = vmatpush1.msra.mxu0 0.0
        %1244 = vmatprep.subr.mxu0 0.0
        %1245 = vmatpush1.msra.mxu0 0.0
        %1246 = vmatprep.subr.mxu0 0.0
        %1247 = vmatpush1.msra.mxu0 0.0
        %1248 = vmatprep.subr.mxu0 0.0
        %1249 = vmatpush1.msra.mxu0 0.0
        %1250 = vmatprep.subr.mxu0 0.0
        %1251 = vmatpush1.msra.mxu0 0.0
        %1252 = vmatprep.subr.mxu0 0.0
        %1253 = vmatpush1.msra.mxu0 0.0
        %1254 = vmatprep.subr.mxu0 0.0
        %1255 = vmatpush1.msra.mxu0 0.0
        %1256 = vmatprep.subr.mxu0 0.0
        %1257 = vmatpush1.msra.mxu0 0.0
        %1258 = vmatprep.subr.mxu0 0.0
        %1259 = vmatpush1.msra.mxu0 0.0
        %1260 = vmatprep.subr.mxu0 0.0
        %1261 = vmatpush1.msra.mxu0 0.0
        %1262 = vmatprep.subr.mxu0 0.0
        %1263 = vmatpush1.msra.mxu0 0.0
        %1264 = vmatprep.subr.mxu0 0.0
        %1265 = vmatpush1.msra.mxu0 0.0
        %1266 = vmatprep.subr.mxu0 0.0
        %1267 = vmatpush1.msra.mxu0 0.0
        %1268 = vmatprep.subr.mxu0 0.0
        %1269 = vmatpush1.msra.mxu0 0.0
        %1270 = vmatprep.subr.mxu0 0.0
        %1271 = vmatpush1.msra.mxu0 0.0
        %1272 = vmatprep.subr.mxu0 0.0
        %1273 = vmatpush1.msra.mxu0 0.0
        %1274 = vmatprep.subr.mxu0 0.0
        %1275 = vmatpush1.msra.mxu0 0.0
        %1276 = vmatprep.subr.mxu0 0.0
        %1277 = vmatpush1.msra.mxu0 0.0
        %1278 = vmatprep.subr.mxu0 0.0
        %1279 = vmatpush1.msra.mxu0 0.0
        %1280 = vmatprep.subr.mxu0 0.0
        %1281 = vmatpush1.msra.mxu0 0.0
        %1282 = vmatprep.subr.mxu0 0.0
        %1283 = vmatpush1.msra.mxu0 0.0
        %1284 = vmatprep.subr.mxu0 0.0
        %1285 = vmatpush1.msra.mxu0 0.0
        %1286 = vmatprep.subr.mxu0 0.0
        %1287 = vmatpush1.msra.mxu0 0.0
        %1288 = vmatprep.subr.mxu0 0.0
        %1289 = vmatpush1.msra.mxu0 0.0
        %1290 = vmatprep.subr.mxu0 0.0
        %1291 = vmatpush1.msra.mxu0 0.0
        %1292 = vmatprep.subr.mxu0 0.0
        %1293 = vmatpush1.msra.mxu0 0.0
        %1294 = vmatprep.subr.mxu0 0.0
        %1295 = vmatpush1.msra.mxu0 0.0
        %1296 = vmatprep.subr.mxu0 0.0
        %1297 = vmatpush1.msra.mxu0 0.0
        %1298 = vmatprep.subr.mxu0 0.0
        %1299 = vmatpush1.msra.mxu0 0.0
        %1300 = vmatprep.mubr.f32.mxu0 0.0
        %1301 = vmatmul.mubr.f32.gmra.mrb[0].mxu0 %v1102
        %v1302 = vpop.f32.mrb[0].mxu0
        %v1303 = vadd.f32 0.0, %v1302
        %v1304 = vpop.f32.mrb[0].mxu0
        %1305 = vmatprep.mubr.f32.mxu0 0.0
        %1306 = vmatmul.mubr.f32.gmra.mrb[0].mxu0 %v1105
        %v1307 = vpop.f32.mrb[0].mxu0
        %v1308 = vadd.f32 0.0, %v1307
        %v1309 = vpop.f32.mrb[0].mxu0
        %1310 = vmatprep.mubr.f32.mxu0 0.0
        %1311 = vmatmul.mubr.f32.gmra.mrb[0].mxu0 %v1108
        %v1312 = vpop.f32.mrb[0].mxu0
        %v1313 = vadd.f32 0.0, %v1312
        %v1314 = vpop.f32.mrb[0].mxu0
        %1315 = vmatprep.mubr.f32.mxu0 0.0
        %1316 = vmatmul.mubr.f32.gmra.mrb[0].mxu0 %v1111
        %v1317 = vpop.f32.mrb[0].mxu0
        %v1318 = vadd.f32 0.0, %v1317
        %v1319 = vpop.f32.mrb[0].mxu0
        %1320 = vmatprep.mubr.f32.mxu0 0.0
        %1321 = vmatmul.mubr.f32.gmra.mrb[0].mxu0 %v1114
        %v1322 = vpop.f32.mrb[0].mxu0
        %v1323 = vadd.f32 0.0, %v1322
        %v1324 = vpop.f32.mrb[0].mxu0
        %1325 = vmatprep.mubr.f32.mxu0 0.0
        %1326 = vmatmul.mubr.f32.gmra.mrb[0].mxu0 %v1117
        %v1327 = vpop.f32.mrb[0].mxu0
        %v1328 = vadd.f32 0.0, %v1327
        %v1329 = vpop.f32.mrb[0].mxu0
        %1330 = vmatprep.mubr.f32.mxu0 0.0
        %1331 = vmatmul.mubr.f32.gmra.mrb[0].mxu0 %v1120
        %v1332 = vpop.f32.mrb[0].mxu0
        %v1333 = vadd.f32 0.0, %v1332
        %v1334 = vpop.f32.mrb[0].mxu0
        %1335 = vmatprep.mubr.f32.mxu0 0.0
        %1336 = vmatmul.mubr.f32.gmra.mrb[0].mxu0 %v1123
        %v1337 = vpop.f32.mrb[0].mxu0
        %v1338 = vadd.f32 0.0, %v1337
        %v1339 = vpop.f32.mrb[0].mxu0
        %1340 = vdwg.mxu0
        %v1341 = vmax.f32 %v1338, %v1308
        %v1342 = vadd.f32 %v1195, %v1341
        %v1343 = vmax.f32 %v1303, %v1313
        %v1344 = vadd.f32 %v1200, %v1343
        %v1345 = vmax.f32 %v1308, %v1318
        %v1346 = vadd.f32 %v1205, %v1345
        %v1347 = vmax.f32 %v1313, %v1323
        %v1348 = vadd.f32 %v1210, %v1347
        %v1349 = vmax.f32 %v1318, %v1328
        %v1350 = vadd.f32 %v1215, %v1349
        %v1351 = vmax.f32 %v1323, %v1333
        %v1352 = vadd.f32 %v1220, %v1351
        %v1353 = vmax.f32 %v1328, %v1338
        %v1354 = vadd.f32 %v1225, %v1353
        %v1355 = vmax.f32 %v1333, %v1303
        %v1356 = vadd.f32 %v1230, %v1355
        %v1357 = vadd.f32 %v1342, %v1084
        %v1358 = vadd.f32 %v1344, %v1085
        %v1359 = vadd.f32 %v1346, %v1086
        %v1360 = vadd.f32 %v1348, %v1087
        %v1361 = vadd.f32 %v1350, %v1088
        %v1362 = vadd.f32 %v1352, %v1089
        %v1363 = vadd.f32 %v1354, %v1090
        %v1364 = vadd.f32 %v1356, %v1091
        %v1365 = vmax.f32 %v1357, 0.0
        %v1366 = vmax.f32 %v1358, 0.0
        %v1367 = vmax.f32 %v1359, 0.0
        %v1368 = vmax.f32 %v1360, 0.0
        %v1369 = vmax.f32 %v1361, 0.0
        %v1370 = vmax.f32 %v1362, 0.0
        %v1371 = vmax.f32 %v1363, 0.0
        %v1372 = vmax.f32 %v1364, 0.0
        %v1373 = vld [vmem:[%s10] sm:$0x7f]
        %s1374 = scalar_lea.vmem %s10, 8
        %v1375 = vld [vmem:[%s1374] sm:$0x7f]
        %v1377 = vsel %vm545, %v1366, 0
        %v1380 = vsel %vm570, %v1375, 0
        %1382 = vmatprep.subr.mxu0 0.0
        %1383 = vmatpush1.msra.mxu0 %v1380
        %1384 = vmatprep.subr.mxu0 0.0
        %1385 = vmatpush1.msra.mxu0 0.0
        %1386 = vmatprep.subr.mxu0 0.0
        %1387 = vmatpush1.msra.mxu0 0.0
        %1388 = vmatprep.subr.mxu0 0.0
        %1389 = vmatpush1.msra.mxu0 0.0
        %1390 = vmatprep.subr.mxu0 0.0
        %1391 = vmatpush1.msra.mxu0 0.0
        %1392 = vmatprep.subr.mxu0 0.0
        %1393 = vmatpush1.msra.mxu0 0.0
        %1394 = vmatprep.subr.mxu0 0.0
        %1395 = vmatpush1.msra.mxu0 0.0
        %1396 = vmatprep.subr.mxu0 0.0
        %1397 = vmatpush1.msra.mxu0 0.0
        %1398 = vmatprep.subr.mxu0 0.0
        %1399 = vmatpush1.msra.mxu0 0.0
        %1400 = vmatprep.subr.mxu0 0.0
        %1401 = vmatpush1.msra.mxu0 0.0
        %1402 = vmatprep.subr.mxu0 0.0
        %1403 = vmatpush1.msra.mxu0 0.0
        %1404 = vmatprep.subr.mxu0 0.0
        %1405 = vmatpush1.msra.mxu0 0.0
        %1406 = vmatprep.subr.mxu0 0.0
        %1407 = vmatpush1.msra.mxu0 0.0
        %1408 = vmatprep.subr.mxu0 0.0
        %1409 = vmatpush1.msra.mxu0 0.0
        %1410 = vmatprep.subr.mxu0 0.0
        %1411 = vmatpush1.msra.mxu0 0.0
        %1412 = vmatprep.subr.mxu0 0.0
        %1413 = vmatpush1.msra.mxu0 0.0
        %1414 = vmatprep.subr.mxu0 0.0
        %1415 = vmatpush1.msra.mxu0 0.0
        %1416 = vmatprep.subr.mxu0 0.0
        %1417 = vmatpush1.msra.mxu0 0.0
        %1418 = vmatprep.subr.mxu0 0.0
        %1419 = vmatpush1.msra.mxu0 0.0
        %1420 = vmatprep.subr.mxu0 0.0
        %1421 = vmatpush1.msra.mxu0 0.0
        %1422 = vmatprep.subr.mxu0 0.0
        %1423 = vmatpush1.msra.mxu0 0.0
        %1424 = vmatprep.subr.mxu0 0.0
        %1425 = vmatpush1.msra.mxu0 0.0
        %1426 = vmatprep.subr.mxu0 0.0
        %1427 = vmatpush1.msra.mxu0 0.0
        %1428 = vmatprep.subr.mxu0 0.0
        %1429 = vmatpush1.msra.mxu0 0.0
        %1430 = vmatprep.subr.mxu0 0.0
        %1431 = vmatpush1.msra.mxu0 0.0
        %1432 = vmatprep.subr.mxu0 0.0
        %1433 = vmatpush1.msra.mxu0 0.0
        %1434 = vmatprep.subr.mxu0 0.0
        %1435 = vmatpush1.msra.mxu0 0.0
        %1436 = vmatprep.subr.mxu0 0.0
        %1437 = vmatpush1.msra.mxu0 0.0
        %1438 = vmatprep.subr.mxu0 0.0
        %1439 = vmatpush1.msra.mxu0 0.0
        %1440 = vmatprep.subr.mxu0 0.0
        %1441 = vmatpush1.msra.mxu0 0.0
        %1442 = vmatprep.subr.mxu0 0.0
        %1443 = vmatpush1.msra.mxu0 0.0
        %1444 = vmatprep.subr.mxu0 0.0
        %1445 = vmatpush1.msra.mxu0 0.0
        %1446 = vmatprep.mubr.f32.mxu0 0.0
        %1447 = vmatmul.mubr.f32.gmra.mrb[0].mxu0 %v1377
        %v1448 = vpop.f32.mrb[0].mxu0
        %v1449 = vadd.f32 0.0, %v1448
        %v1450 = vpop.f32.mrb[0].mxu0
        %1451 = vdwg.mxu0
        %v1453 = vsel %vm545, %v1365, 0
        %v1456 = vsel %vm570, %v1373, 0
        %1458 = vmatprep.subr.mxu0 0.0
        %1459 = vmatpush1.msra.mxu0 %v1456
        %1460 = vmatprep.subr.mxu0 0.0
        %1461 = vmatpush1.msra.mxu0 0.0
        %1462 = vmatprep.subr.mxu0 0.0
        %1463 = vmatpush1.msra.mxu0 0.0
        %1464 = vmatprep.subr.mxu0 0.0
        %1465 = vmatpush1.msra.mxu0 0.0
        %1466 = vmatprep.subr.mxu0 0.0
        %1467 = vmatpush1.msra.mxu0 0.0
        %1468 = vmatprep.subr.mxu0 0.0
        %1469 = vmatpush1.msra.mxu0 0.0
        %1470 = vmatprep.subr.mxu0 0.0
        %1471 = vmatpush1.msra.mxu0 0.0
        %1472 = vmatprep.subr.mxu0 0.0
        %1473 = vmatpush1.msra.mxu0 0.0
        %1474 = vmatprep.subr.mxu0 0.0
        %1475 = vmatpush1.msra.mxu0 0.0
        %1476 = vmatprep.subr.mxu0 0.0
        %1477 = vmatpush1.msra.mxu0 0.0
        %1478 = vmatprep.subr.mxu0 0.0
        %1479 = vmatpush1.msra.mxu0 0.0
        %1480 = vmatprep.subr.mxu0 0.0
        %1481 = vmatpush1.msra.mxu0 0.0
        %1482 = vmatprep.subr.mxu0 0.0
        %1483 = vmatpush1.msra.mxu0 0.0
        %1484 = vmatprep.subr.mxu0 0.0
        %1485 = vmatpush1.msra.mxu0 0.0
        %1486 = vmatprep.subr.mxu0 0.0
        %1487 = vmatpush1.msra.mxu0 0.0
        %1488 = vmatprep.subr.mxu0 0.0
        %1489 = vmatpush1.msra.mxu0 0.0
        %1490 = vmatprep.subr.mxu0 0.0
        %1491 = vmatpush1.msra.mxu0 0.0
        %1492 = vmatprep.subr.mxu0 0.0
        %1493 = vmatpush1.msra.mxu0 0.0
        %1494 = vmatprep.subr.mxu0 0.0
        %1495 = vmatpush1.msra.mxu0 0.0
        %1496 = vmatprep.subr.mxu0 0.0
        %1497 = vmatpush1.msra.mxu0 0.0
        %1498 = vmatprep.subr.mxu0 0.0
        %1499 = vmatpush1.msra.mxu0 0.0
        %1500 = vmatprep.subr.mxu0 0.0
        %1501 = vmatpush1.msra.mxu0 0.0
        %1502 = vmatprep.subr.mxu0 0.0
        %1503 = vmatpush1.msra.mxu0 0.0
        %1504 = vmatprep.subr.mxu0 0.0
        %1505 = vmatpush1.msra.mxu0 0.0
        %1506 = vmatprep.subr.mxu0 0.0
        %1507 = vmatpush1.msra.mxu0 0.0
        %1508 = vmatprep.subr.mxu0 0.0
        %1509 = vmatpush1.msra.mxu0 0.0
        %1510 = vmatprep.subr.mxu0 0.0
        %1511 = vmatpush1.msra.mxu0 0.0
        %1512 = vmatprep.subr.mxu0 0.0
        %1513 = vmatpush1.msra.mxu0 0.0
        %1514 = vmatprep.subr.mxu0 0.0
        %1515 = vmatpush1.msra.mxu0 0.0
        %1516 = vmatprep.subr.mxu0 0.0
        %1517 = vmatpush1.msra.mxu0 0.0
        %1518 = vmatprep.subr.mxu0 0.0
        %1519 = vmatpush1.msra.mxu0 0.0
        %1520 = vmatprep.subr.mxu0 0.0
        %1521 = vmatpush1.msra.mxu0 0.0
        %1522 = vmatprep.mubr.f32.mxu0 0.0
        %1523 = vmatmul.mubr.f32.gmra.mrb[0].mxu0 %v1453
        %v1524 = vpop.f32.mrb[0].mxu0
        %v1525 = vadd.f32 %v1449, %v1524
        %v1526 = vpop.f32.mrb[0].mxu0
        %1527 = vdwg.mxu0
        %s1528 = scalar_lea.vmem %s10, 16
        %v1529 = vld [vmem:[%s1528] sm:$0x7f]
        %v1531 = vsel %vm545, %v1367, 0
        %v1534 = vsel %vm570, %v1529, 0
        %1536 = vmatprep.subr.mxu0 0.0
        %1537 = vmatpush1.msra.mxu0 %v1534
        %1538 = vmatprep.subr.mxu0 0.0
        %1539 = vmatpush1.msra.mxu0 0.0
        %1540 = vmatprep.subr.mxu0 0.0
        %1541 = vmatpush1.msra.mxu0 0.0
        %1542 = vmatprep.subr.mxu0 0.0
        %1543 = vmatpush1.msra.mxu0 0.0
        %1544 = vmatprep.subr.mxu0 0.0
        %1545 = vmatpush1.msra.mxu0 0.0
        %1546 = vmatprep.subr.mxu0 0.0
        %1547 = vmatpush1.msra.mxu0 0.0
        %1548 = vmatprep.subr.mxu0 0.0
        %1549 = vmatpush1.msra.mxu0 0.0
        %1550 = vmatprep.subr.mxu0 0.0
        %1551 = vmatpush1.msra.mxu0 0.0
        %1552 = vmatprep.subr.mxu0 0.0
        %1553 = vmatpush1.msra.mxu0 0.0
        %1554 = vmatprep.subr.mxu0 0.0
        %1555 = vmatpush1.msra.mxu0 0.0
        %1556 = vmatprep.subr.mxu0 0.0
        %1557 = vmatpush1.msra.mxu0 0.0
        %1558 = vmatprep.subr.mxu0 0.0
        %1559 = vmatpush1.msra.mxu0 0.0
        %1560 = vmatprep.subr.mxu0 0.0
        %1561 = vmatpush1.msra.mxu0 0.0
        %1562 = vmatprep.subr.mxu0 0.0
        %1563 = vmatpush1.msra.mxu0 0.0
        %1564 = vmatprep.subr.mxu0 0.0
        %1565 = vmatpush1.msra.mxu0 0.0
        %1566 = vmatprep.subr.mxu0 0.0
        %1567 = vmatpush1.msra.mxu0 0.0
        %1568 = vmatprep.subr.mxu0 0.0
        %1569 = vmatpush1.msra.mxu0 0.0
        %1570 = vmatprep.subr.mxu0 0.0
        %1571 = vmatpush1.msra.mxu0 0.0
        %1572 = vmatprep.subr.mxu0 0.0
        %1573 = vmatpush1.msra.mxu0 0.0
        %1574 = vmatprep.subr.mxu0 0.0
        %1575 = vmatpush1.msra.mxu0 0.0
        %1576 = vmatprep.subr.mxu0 0.0
        %1577 = vmatpush1.msra.mxu0 0.0
        %1578 = vmatprep.subr.mxu0 0.0
        %1579 = vmatpush1.msra.mxu0 0.0
        %1580 = vmatprep.subr.mxu0 0.0
        %1581 = vmatpush1.msra.mxu0 0.0
        %1582 = vmatprep.subr.mxu0 0.0
        %1583 = vmatpush1.msra.mxu0 0.0
        %1584 = vmatprep.subr.mxu0 0.0
        %1585 = vmatpush1.msra.mxu0 0.0
        %1586 = vmatprep.subr.mxu0 0.0
        %1587 = vmatpush1.msra.mxu0 0.0
        %1588 = vmatprep.subr.mxu0 0.0
        %1589 = vmatpush1.msra.mxu0 0.0
        %1590 = vmatprep.subr.mxu0 0.0
        %1591 = vmatpush1.msra.mxu0 0.0
        %1592 = vmatprep.subr.mxu0 0.0
        %1593 = vmatpush1.msra.mxu0 0.0
        %1594 = vmatprep.subr.mxu0 0.0
        %1595 = vmatpush1.msra.mxu0 0.0
        %1596 = vmatprep.subr.mxu0 0.0
        %1597 = vmatpush1.msra.mxu0 0.0
        %1598 = vmatprep.subr.mxu0 0.0
        %1599 = vmatpush1.msra.mxu0 0.0
        %1600 = vmatprep.mubr.f32.mxu0 0.0
        %1601 = vmatmul.mubr.f32.gmra.mrb[0].mxu0 %v1531
        %v1602 = vpop.f32.mrb[0].mxu0
        %v1603 = vadd.f32 0.0, %v1602
        %v1604 = vpop.f32.mrb[0].mxu0
        %1605 = vdwg.mxu0
        %v1606 = vadd.f32 %v1525, %v1603
        %s1607 = scalar_lea.vmem %s10, 24
        %v1608 = vld [vmem:[%s1607] sm:$0x7f]
        %v1610 = vsel %vm545, %v1368, 0
        %v1613 = vsel %vm570, %v1608, 0
        %1615 = vmatprep.subr.mxu0 0.0
        %1616 = vmatpush1.msra.mxu0 %v1613
        %1617 = vmatprep.subr.mxu0 0.0
        %1618 = vmatpush1.msra.mxu0 0.0
        %1619 = vmatprep.subr.mxu0 0.0
        %1620 = vmatpush1.msra.mxu0 0.0
        %1621 = vmatprep.subr.mxu0 0.0
        %1622 = vmatpush1.msra.mxu0 0.0
        %1623 = vmatprep.subr.mxu0 0.0
        %1624 = vmatpush1.msra.mxu0 0.0
        %1625 = vmatprep.subr.mxu0 0.0
        %1626 = vmatpush1.msra.mxu0 0.0
        %1627 = vmatprep.subr.mxu0 0.0
        %1628 = vmatpush1.msra.mxu0 0.0
        %1629 = vmatprep.subr.mxu0 0.0
        %1630 = vmatpush1.msra.mxu0 0.0
        %1631 = vmatprep.subr.mxu0 0.0
        %1632 = vmatpush1.msra.mxu0 0.0
        %1633 = vmatprep.subr.mxu0 0.0
        %1634 = vmatpush1.msra.mxu0 0.0
        %1635 = vmatprep.subr.mxu0 0.0
        %1636 = vmatpush1.msra.mxu0 0.0
        %1637 = vmatprep.subr.mxu0 0.0
        %1638 = vmatpush1.msra.mxu0 0.0
        %1639 = vmatprep.subr.mxu0 0.0
        %1640 = vmatpush1.msra.mxu0 0.0
        %1641 = vmatprep.subr.mxu0 0.0
        %1642 = vmatpush1.msra.mxu0 0.0
        %1643 = vmatprep.subr.mxu0 0.0
        %1644 = vmatpush1.msra.mxu0 0.0
        %1645 = vmatprep.subr.mxu0 0.0
        %1646 = vmatpush1.msra.mxu0 0.0
        %1647 = vmatprep.subr.mxu0 0.0
        %1648 = vmatpush1.msra.mxu0 0.0
        %1649 = vmatprep.subr.mxu0 0.0
        %1650 = vmatpush1.msra.mxu0 0.0
        %1651 = vmatprep.subr.mxu0 0.0
        %1652 = vmatpush1.msra.mxu0 0.0
        %1653 = vmatprep.subr.mxu0 0.0
        %1654 = vmatpush1.msra.mxu0 0.0
        %1655 = vmatprep.subr.mxu0 0.0
        %1656 = vmatpush1.msra.mxu0 0.0
        %1657 = vmatprep.subr.mxu0 0.0
        %1658 = vmatpush1.msra.mxu0 0.0
        %1659 = vmatprep.subr.mxu0 0.0
        %1660 = vmatpush1.msra.mxu0 0.0
        %1661 = vmatprep.subr.mxu0 0.0
        %1662 = vmatpush1.msra.mxu0 0.0
        %1663 = vmatprep.subr.mxu0 0.0
        %1664 = vmatpush1.msra.mxu0 0.0
        %1665 = vmatprep.subr.mxu0 0.0
        %1666 = vmatpush1.msra.mxu0 0.0
        %1667 = vmatprep.subr.mxu0 0.0
        %1668 = vmatpush1.msra.mxu0 0.0
        %1669 = vmatprep.subr.mxu0 0.0
        %1670 = vmatpush1.msra.mxu0 0.0
        %1671 = vmatprep.subr.mxu0 0.0
        %1672 = vmatpush1.msra.mxu0 0.0
        %1673 = vmatprep.subr.mxu0 0.0
        %1674 = vmatpush1.msra.mxu0 0.0
        %1675 = vmatprep.subr.mxu0 0.0
        %1676 = vmatpush1.msra.mxu0 0.0
        %1677 = vmatprep.subr.mxu0 0.0
        %1678 = vmatpush1.msra.mxu0 0.0
        %1679 = vmatprep.mubr.f32.mxu0 0.0
        %1680 = vmatmul.mubr.f32.gmra.mrb[0].mxu0 %v1610
        %v1681 = vpop.f32.mrb[0].mxu0
        %v1682 = vadd.f32 0.0, %v1681
        %v1683 = vpop.f32.mrb[0].mxu0
        %1684 = vdwg.mxu0
        %v1685 = vadd.f32 %v1606, %v1682
        %s1686 = scalar_lea.vmem %s10, 32
        %v1687 = vld [vmem:[%s1686] sm:$0x7f]
        %v1689 = vsel %vm545, %v1369, 0
        %v1692 = vsel %vm570, %v1687, 0
        %1694 = vmatprep.subr.mxu0 0.0
        %1695 = vmatpush1.msra.mxu0 %v1692
        %1696 = vmatprep.subr.mxu0 0.0
        %1697 = vmatpush1.msra.mxu0 0.0
        %1698 = vmatprep.subr.mxu0 0.0
        %1699 = vmatpush1.msra.mxu0 0.0
        %1700 = vmatprep.subr.mxu0 0.0
        %1701 = vmatpush1.msra.mxu0 0.0
        %1702 = vmatprep.subr.mxu0 0.0
        %1703 = vmatpush1.msra.mxu0 0.0
        %1704 = vmatprep.subr.mxu0 0.0
        %1705 = vmatpush1.msra.mxu0 0.0
        %1706 = vmatprep.subr.mxu0 0.0
        %1707 = vmatpush1.msra.mxu0 0.0
        %1708 = vmatprep.subr.mxu0 0.0
        %1709 = vmatpush1.msra.mxu0 0.0
        %1710 = vmatprep.subr.mxu0 0.0
        %1711 = vmatpush1.msra.mxu0 0.0
        %1712 = vmatprep.subr.mxu0 0.0
        %1713 = vmatpush1.msra.mxu0 0.0
        %1714 = vmatprep.subr.mxu0 0.0
        %1715 = vmatpush1.msra.mxu0 0.0
        %1716 = vmatprep.subr.mxu0 0.0
        %1717 = vmatpush1.msra.mxu0 0.0
        %1718 = vmatprep.subr.mxu0 0.0
        %1719 = vmatpush1.msra.mxu0 0.0
        %1720 = vmatprep.subr.mxu0 0.0
        %1721 = vmatpush1.msra.mxu0 0.0
        %1722 = vmatprep.subr.mxu0 0.0
        %1723 = vmatpush1.msra.mxu0 0.0
        %1724 = vmatprep.subr.mxu0 0.0
        %1725 = vmatpush1.msra.mxu0 0.0
        %1726 = vmatprep.subr.mxu0 0.0
        %1727 = vmatpush1.msra.mxu0 0.0
        %1728 = vmatprep.subr.mxu0 0.0
        %1729 = vmatpush1.msra.mxu0 0.0
        %1730 = vmatprep.subr.mxu0 0.0
        %1731 = vmatpush1.msra.mxu0 0.0
        %1732 = vmatprep.subr.mxu0 0.0
        %1733 = vmatpush1.msra.mxu0 0.0
        %1734 = vmatprep.subr.mxu0 0.0
        %1735 = vmatpush1.msra.mxu0 0.0
        %1736 = vmatprep.subr.mxu0 0.0
        %1737 = vmatpush1.msra.mxu0 0.0
        %1738 = vmatprep.subr.mxu0 0.0
        %1739 = vmatpush1.msra.mxu0 0.0
        %1740 = vmatprep.subr.mxu0 0.0
        %1741 = vmatpush1.msra.mxu0 0.0
        %1742 = vmatprep.subr.mxu0 0.0
        %1743 = vmatpush1.msra.mxu0 0.0
        %1744 = vmatprep.subr.mxu0 0.0
        %1745 = vmatpush1.msra.mxu0 0.0
        %1746 = vmatprep.subr.mxu0 0.0
        %1747 = vmatpush1.msra.mxu0 0.0
        %1748 = vmatprep.subr.mxu0 0.0
        %1749 = vmatpush1.msra.mxu0 0.0
        %1750 = vmatprep.subr.mxu0 0.0
        %1751 = vmatpush1.msra.mxu0 0.0
        %1752 = vmatprep.subr.mxu0 0.0
        %1753 = vmatpush1.msra.mxu0 0.0
        %1754 = vmatprep.subr.mxu0 0.0
        %1755 = vmatpush1.msra.mxu0 0.0
        %1756 = vmatprep.subr.mxu0 0.0
        %1757 = vmatpush1.msra.mxu0 0.0
        %1758 = vmatprep.mubr.f32.mxu0 0.0
        %1759 = vmatmul.mubr.f32.gmra.mrb[0].mxu0 %v1689
        %v1760 = vpop.f32.mrb[0].mxu0
        %v1761 = vadd.f32 0.0, %v1760
        %v1762 = vpop.f32.mrb[0].mxu0
        %1763 = vdwg.mxu0
        %v1764 = vadd.f32 %v1685, %v1761
        %s1765 = scalar_lea.vmem %s10, 40
        %v1766 = vld [vmem:[%s1765] sm:$0x7f]
        %v1768 = vsel %vm545, %v1370, 0
        %v1771 = vsel %vm570, %v1766, 0
        %1773 = vmatprep.subr.mxu0 0.0
        %1774 = vmatpush1.msra.mxu0 %v1771
        %1775 = vmatprep.subr.mxu0 0.0
        %1776 = vmatpush1.msra.mxu0 0.0
        %1777 = vmatprep.subr.mxu0 0.0
        %1778 = vmatpush1.msra.mxu0 0.0
        %1779 = vmatprep.subr.mxu0 0.0
        %1780 = vmatpush1.msra.mxu0 0.0
        %1781 = vmatprep.subr.mxu0 0.0
        %1782 = vmatpush1.msra.mxu0 0.0
        %1783 = vmatprep.subr.mxu0 0.0
        %1784 = vmatpush1.msra.mxu0 0.0
        %1785 = vmatprep.subr.mxu0 0.0
        %1786 = vmatpush1.msra.mxu0 0.0
        %1787 = vmatprep.subr.mxu0 0.0
        %1788 = vmatpush1.msra.mxu0 0.0
        %1789 = vmatprep.subr.mxu0 0.0
        %1790 = vmatpush1.msra.mxu0 0.0
        %1791 = vmatprep.subr.mxu0 0.0
        %1792 = vmatpush1.msra.mxu0 0.0
        %1793 = vmatprep.subr.mxu0 0.0
        %1794 = vmatpush1.msra.mxu0 0.0
        %1795 = vmatprep.subr.mxu0 0.0
        %1796 = vmatpush1.msra.mxu0 0.0
        %1797 = vmatprep.subr.mxu0 0.0
        %1798 = vmatpush1.msra.mxu0 0.0
        %1799 = vmatprep.subr.mxu0 0.0
        %1800 = vmatpush1.msra.mxu0 0.0
        %1801 = vmatprep.subr.mxu0 0.0
        %1802 = vmatpush1.msra.mxu0 0.0
        %1803 = vmatprep.subr.mxu0 0.0
        %1804 = vmatpush1.msra.mxu0 0.0
        %1805 = vmatprep.subr.mxu0 0.0
        %1806 = vmatpush1.msra.mxu0 0.0
        %1807 = vmatprep.subr.mxu0 0.0
        %1808 = vmatpush1.msra.mxu0 0.0
        %1809 = vmatprep.subr.mxu0 0.0
        %1810 = vmatpush1.msra.mxu0 0.0
        %1811 = vmatprep.subr.mxu0 0.0
        %1812 = vmatpush1.msra.mxu0 0.0
        %1813 = vmatprep.subr.mxu0 0.0
        %1814 = vmatpush1.msra.mxu0 0.0
        %1815 = vmatprep.subr.mxu0 0.0
        %1816 = vmatpush1.msra.mxu0 0.0
        %1817 = vmatprep.subr.mxu0 0.0
        %1818 = vmatpush1.msra.mxu0 0.0
        %1819 = vmatprep.subr.mxu0 0.0
        %1820 = vmatpush1.msra.mxu0 0.0
        %1821 = vmatprep.subr.mxu0 0.0
        %1822 = vmatpush1.msra.mxu0 0.0
        %1823 = vmatprep.subr.mxu0 0.0
        %1824 = vmatpush1.msra.mxu0 0.0
        %1825 = vmatprep.subr.mxu0 0.0
        %1826 = vmatpush1.msra.mxu0 0.0
        %1827 = vmatprep.subr.mxu0 0.0
        %1828 = vmatpush1.msra.mxu0 0.0
        %1829 = vmatprep.subr.mxu0 0.0
        %1830 = vmatpush1.msra.mxu0 0.0
        %1831 = vmatprep.subr.mxu0 0.0
        %1832 = vmatpush1.msra.mxu0 0.0
        %1833 = vmatprep.subr.mxu0 0.0
        %1834 = vmatpush1.msra.mxu0 0.0
        %1835 = vmatprep.subr.mxu0 0.0
        %1836 = vmatpush1.msra.mxu0 0.0
        %1837 = vmatprep.mubr.f32.mxu0 0.0
        %1838 = vmatmul.mubr.f32.gmra.mrb[0].mxu0 %v1768
        %v1839 = vpop.f32.mrb[0].mxu0
        %v1840 = vadd.f32 0.0, %v1839
        %v1841 = vpop.f32.mrb[0].mxu0
        %1842 = vdwg.mxu0
        %v1843 = vadd.f32 %v1764, %v1840
        %s1844 = scalar_lea.vmem %s10, 48
        %v1845 = vld [vmem:[%s1844] sm:$0x7f]
        %v1847 = vsel %vm545, %v1371, 0
        %v1850 = vsel %vm570, %v1845, 0
        %1852 = vmatprep.subr.mxu0 0.0
        %1853 = vmatpush1.msra.mxu0 %v1850
        %1854 = vmatprep.subr.mxu0 0.0
        %1855 = vmatpush1.msra.mxu0 0.0
        %1856 = vmatprep.subr.mxu0 0.0
        %1857 = vmatpush1.msra.mxu0 0.0
        %1858 = vmatprep.subr.mxu0 0.0
        %1859 = vmatpush1.msra.mxu0 0.0
        %1860 = vmatprep.subr.mxu0 0.0
        %1861 = vmatpush1.msra.mxu0 0.0
        %1862 = vmatprep.subr.mxu0 0.0
        %1863 = vmatpush1.msra.mxu0 0.0
        %1864 = vmatprep.subr.mxu0 0.0
        %1865 = vmatpush1.msra.mxu0 0.0
        %1866 = vmatprep.subr.mxu0 0.0
        %1867 = vmatpush1.msra.mxu0 0.0
        %1868 = vmatprep.subr.mxu0 0.0
        %1869 = vmatpush1.msra.mxu0 0.0
        %1870 = vmatprep.subr.mxu0 0.0
        %1871 = vmatpush1.msra.mxu0 0.0
        %1872 = vmatprep.subr.mxu0 0.0
        %1873 = vmatpush1.msra.mxu0 0.0
        %1874 = vmatprep.subr.mxu0 0.0
        %1875 = vmatpush1.msra.mxu0 0.0
        %1876 = vmatprep.subr.mxu0 0.0
        %1877 = vmatpush1.msra.mxu0 0.0
        %1878 = vmatprep.subr.mxu0 0.0
        %1879 = vmatpush1.msra.mxu0 0.0
        %1880 = vmatprep.subr.mxu0 0.0
        %1881 = vmatpush1.msra.mxu0 0.0
        %1882 = vmatprep.subr.mxu0 0.0
        %1883 = vmatpush1.msra.mxu0 0.0
        %1884 = vmatprep.subr.mxu0 0.0
        %1885 = vmatpush1.msra.mxu0 0.0
        %1886 = vmatprep.subr.mxu0 0.0
        %1887 = vmatpush1.msra.mxu0 0.0
        %1888 = vmatprep.subr.mxu0 0.0
        %1889 = vmatpush1.msra.mxu0 0.0
        %1890 = vmatprep.subr.mxu0 0.0
        %1891 = vmatpush1.msra.mxu0 0.0
        %1892 = vmatprep.subr.mxu0 0.0
        %1893 = vmatpush1.msra.mxu0 0.0
        %1894 = vmatprep.subr.mxu0 0.0
        %1895 = vmatpush1.msra.mxu0 0.0
        %1896 = vmatprep.subr.mxu0 0.0
        %1897 = vmatpush1.msra.mxu0 0.0
        %1898 = vmatprep.subr.mxu0 0.0
        %1899 = vmatpush1.msra.mxu0 0.0
        %1900 = vmatprep.subr.mxu0 0.0
        %1901 = vmatpush1.msra.mxu0 0.0
        %1902 = vmatprep.subr.mxu0 0.0
        %1903 = vmatpush1.msra.mxu0 0.0
        %1904 = vmatprep.subr.mxu0 0.0
        %1905 = vmatpush1.msra.mxu0 0.0
        %1906 = vmatprep.subr.mxu0 0.0
        %1907 = vmatpush1.msra.mxu0 0.0
        %1908 = vmatprep.subr.mxu0 0.0
        %1909 = vmatpush1.msra.mxu0 0.0
        %1910 = vmatprep.subr.mxu0 0.0
        %1911 = vmatpush1.msra.mxu0 0.0
        %1912 = vmatprep.subr.mxu0 0.0
        %1913 = vmatpush1.msra.mxu0 0.0
        %1914 = vmatprep.subr.mxu0 0.0
        %1915 = vmatpush1.msra.mxu0 0.0
        %1916 = vmatprep.mubr.f32.mxu0 0.0
        %1917 = vmatmul.mubr.f32.gmra.mrb[0].mxu0 %v1847
        %v1918 = vpop.f32.mrb[0].mxu0
        %v1919 = vadd.f32 0.0, %v1918
        %v1920 = vpop.f32.mrb[0].mxu0
        %1921 = vdwg.mxu0
        %v1922 = vadd.f32 %v1843, %v1919
        %s1923 = scalar_lea.vmem %s10, 56
        %v1924 = vld [vmem:[%s1923] sm:$0x7f]
        %v1926 = vsel %vm545, %v1372, 0
        %v1929 = vsel %vm570, %v1924, 0
        %1931 = vmatprep.subr.mxu0 0.0
        %1932 = vmatpush1.msra.mxu0 %v1929
        %1933 = vmatprep.subr.mxu0 0.0
        %1934 = vmatpush1.msra.mxu0 0.0
        %1935 = vmatprep.subr.mxu0 0.0
        %1936 = vmatpush1.msra.mxu0 0.0
        %1937 = vmatprep.subr.mxu0 0.0
        %1938 = vmatpush1.msra.mxu0 0.0
        %1939 = vmatprep.subr.mxu0 0.0
        %1940 = vmatpush1.msra.mxu0 0.0
        %1941 = vmatprep.subr.mxu0 0.0
        %1942 = vmatpush1.msra.mxu0 0.0
        %1943 = vmatprep.subr.mxu0 0.0
        %1944 = vmatpush1.msra.mxu0 0.0
        %1945 = vmatprep.subr.mxu0 0.0
        %1946 = vmatpush1.msra.mxu0 0.0
        %1947 = vmatprep.subr.mxu0 0.0
        %1948 = vmatpush1.msra.mxu0 0.0
        %1949 = vmatprep.subr.mxu0 0.0
        %1950 = vmatpush1.msra.mxu0 0.0
        %1951 = vmatprep.subr.mxu0 0.0
        %1952 = vmatpush1.msra.mxu0 0.0
        %1953 = vmatprep.subr.mxu0 0.0
        %1954 = vmatpush1.msra.mxu0 0.0
        %1955 = vmatprep.subr.mxu0 0.0
        %1956 = vmatpush1.msra.mxu0 0.0
        %1957 = vmatprep.subr.mxu0 0.0
        %1958 = vmatpush1.msra.mxu0 0.0
        %1959 = vmatprep.subr.mxu0 0.0
        %1960 = vmatpush1.msra.mxu0 0.0
        %1961 = vmatprep.subr.mxu0 0.0
        %1962 = vmatpush1.msra.mxu0 0.0
        %1963 = vmatprep.subr.mxu0 0.0
        %1964 = vmatpush1.msra.mxu0 0.0
        %1965 = vmatprep.subr.mxu0 0.0
        %1966 = vmatpush1.msra.mxu0 0.0
        %1967 = vmatprep.subr.mxu0 0.0
        %1968 = vmatpush1.msra.mxu0 0.0
        %1969 = vmatprep.subr.mxu0 0.0
        %1970 = vmatpush1.msra.mxu0 0.0
        %1971 = vmatprep.subr.mxu0 0.0
        %1972 = vmatpush1.msra.mxu0 0.0
        %1973 = vmatprep.subr.mxu0 0.0
        %1974 = vmatpush1.msra.mxu0 0.0
        %1975 = vmatprep.subr.mxu0 0.0
        %1976 = vmatpush1.msra.mxu0 0.0
        %1977 = vmatprep.subr.mxu0 0.0
        %1978 = vmatpush1.msra.mxu0 0.0
        %1979 = vmatprep.subr.mxu0 0.0
        %1980 = vmatpush1.msra.mxu0 0.0
        %1981 = vmatprep.subr.mxu0 0.0
        %1982 = vmatpush1.msra.mxu0 0.0
        %1983 = vmatprep.subr.mxu0 0.0
        %1984 = vmatpush1.msra.mxu0 0.0
        %1985 = vmatprep.subr.mxu0 0.0
        %1986 = vmatpush1.msra.mxu0 0.0
        %1987 = vmatprep.subr.mxu0 0.0
        %1988 = vmatpush1.msra.mxu0 0.0
        %1989 = vmatprep.subr.mxu0 0.0
        %1990 = vmatpush1.msra.mxu0 0.0
        %1991 = vmatprep.subr.mxu0 0.0
        %1992 = vmatpush1.msra.mxu0 0.0
        %1993 = vmatprep.subr.mxu0 0.0
        %1994 = vmatpush1.msra.mxu0 0.0
        %1995 = vmatprep.mubr.f32.mxu0 0.0
        %1996 = vmatmul.mubr.f32.gmra.mrb[0].mxu0 %v1926
        %v1997 = vpop.f32.mrb[0].mxu0
        %v1998 = vadd.f32 0.0, %v1997
        %v1999 = vpop.f32.mrb[0].mxu0
        %2000 = vdwg.mxu0
        %v2001 = vadd.f32 %v1922, %v1998
        %v2002 = vld [vmem:[%s11] sm:$0x1]
        %v2004 = vlaneseq
        %v2005 = vshrl.u32 %v2004, 7
        %v2006 = vsub.s32 0, %v2005
        %v2007 = vrot.slane %v2002, %v2006
        %v2009 = vadd.f32 %v2001, %v2007
        %v2010 = vmax.f32 %v2009, 0.0
        %v2011 = vld [vmem:[%s12] sm:$0xff]
        %v2012 = vld [vmem:[%s12 + $0x8] sm:$0xff]
        %v2013 = vld [vmem:[%s12 + $0x10] sm:$0xff]
        %v2014 = vld [vmem:[%s12 + $0x18] sm:$0xff]
        %v2015 = vld [vmem:[%s13] sm:$0x1]
        %v2017 = vlaneseq
        %v2018 = vshrl.u32 %v2017, 7
        %v2019 = vsub.s32 0, %v2018
        %v2020 = vrot.slane %v2015, %v2019
        %vm2022 = vcmask 261120
        %v2024 = vsel %vm2022, %v2010, 0
        %2026 = vmatprep.subr.mxu0 0.0
        %2027 = vmatpush1.msra.mxu0 %v2011
        %2028 = vmatprep.subr.mxu0 0.0
        %2029 = vmatpush1.msra.mxu0 %v2012
        %2030 = vmatprep.subr.mxu0 0.0
        %2031 = vmatpush1.msra.mxu0 %v2013
        %2032 = vmatprep.subr.mxu0 0.0
        %2033 = vmatpush1.msra.mxu0 %v2014
        %2034 = vmatprep.subr.mxu0 0.0
        %2035 = vmatpush1.msra.mxu0 0.0
        %2036 = vmatprep.subr.mxu0 0.0
        %2037 = vmatpush1.msra.mxu0 0.0
        %2038 = vmatprep.subr.mxu0 0.0
        %2039 = vmatpush1.msra.mxu0 0.0
        %2040 = vmatprep.subr.mxu0 0.0
        %2041 = vmatpush1.msra.mxu0 0.0
        %2042 = vmatprep.subr.mxu0 0.0
        %2043 = vmatpush1.msra.mxu0 0.0
        %2044 = vmatprep.subr.mxu0 0.0
        %2045 = vmatpush1.msra.mxu0 0.0
        %2046 = vmatprep.subr.mxu0 0.0
        %2047 = vmatpush1.msra.mxu0 0.0
        %2048 = vmatprep.subr.mxu0 0.0
        %2049 = vmatpush1.msra.mxu0 0.0
        %2050 = vmatprep.subr.mxu0 0.0
        %2051 = vmatpush1.msra.mxu0 0.0
        %2052 = vmatprep.subr.mxu0 0.0
        %2053 = vmatpush1.msra.mxu0 0.0
        %2054 = vmatprep.subr.mxu0 0.0
        %2055 = vmatpush1.msra.mxu0 0.0
        %2056 = vmatprep.subr.mxu0 0.0
        %2057 = vmatpush1.msra.mxu0 0.0
        %2058 = vmatprep.subr.mxu0 0.0
        %2059 = vmatpush1.msra.mxu0 0.0
        %2060 = vmatprep.subr.mxu0 0.0
        %2061 = vmatpush1.msra.mxu0 0.0
        %2062 = vmatprep.subr.mxu0 0.0
        %2063 = vmatpush1.msra.mxu0 0.0
        %2064 = vmatprep.subr.mxu0 0.0
        %2065 = vmatpush1.msra.mxu0 0.0
        %2066 = vmatprep.subr.mxu0 0.0
        %2067 = vmatpush1.msra.mxu0 0.0
        %2068 = vmatprep.subr.mxu0 0.0
        %2069 = vmatpush1.msra.mxu0 0.0
        %2070 = vmatprep.subr.mxu0 0.0
        %2071 = vmatpush1.msra.mxu0 0.0
        %2072 = vmatprep.subr.mxu0 0.0
        %2073 = vmatpush1.msra.mxu0 0.0
        %2074 = vmatprep.subr.mxu0 0.0
        %2075 = vmatpush1.msra.mxu0 0.0
        %2076 = vmatprep.subr.mxu0 0.0
        %2077 = vmatpush1.msra.mxu0 0.0
        %2078 = vmatprep.subr.mxu0 0.0
        %2079 = vmatpush1.msra.mxu0 0.0
        %2080 = vmatprep.subr.mxu0 0.0
        %2081 = vmatpush1.msra.mxu0 0.0
        %2082 = vmatprep.subr.mxu0 0.0
        %2083 = vmatpush1.msra.mxu0 0.0
        %2084 = vmatprep.subr.mxu0 0.0
        %2085 = vmatpush1.msra.mxu0 0.0
        %2086 = vmatprep.subr.mxu0 0.0
        %2087 = vmatpush1.msra.mxu0 0.0
        %2088 = vmatprep.subr.mxu0 0.0
        %2089 = vmatpush1.msra.mxu0 0.0
        %2090 = vmatprep.mubr.f32.mxu0 0.0
        %2091 = vmatmul.mubr.f32.gmra.mrb[0].mxu0 %v2024
        %v2092 = vpop.f32.mrb[0].mxu0
        %v2093 = vadd.f32 %v2020, %v2092
        %v2094 = vpop.f32.mrb[0].mxu0
        %2095 = vdwg.mxu0
        %2096 = vst [vmem:[%s527] sm:$0xff] %v2093
        %s2097 = sand.u32 %s335, 1
        %s2098 = scalar_lea.sflag [#allocation4], %s2097
        %s2099 = sand.u32 %s335, 1
        %s2100 = smul.addr %s2099, 8
        %s2101 = scalar_lea.vmem [#allocation3], %s2100
        // Predicated region
        $region115: #{_lambda_.1} parent=109 // pred_check
          %p2102 = pneg %p345
        $region116: #{_lambda_.1} parent=109 // pred_check_branch
          %2104 = sbr.rel (%p2102) target = $region118
        $region117: #{_lambda_.1} parent=109 // pred_region
          %s2106 = ssub.s32 128, 128
          %2107 = vsyncadd %s2098, %s2106
          %s2108 = smul.addr %s28, 128
          %s2109 = scalar_lea.hbm %s14, %s2108
          %s2111 = sshll.u32 %s2101, 4
          %s2112 = int_to_ptr.vmem [resolvable:$true] %s2111
          %2114 = dma.vmem_to_hbm [thread:$0]  %s2112, 128, %s2109, %s2098
        $region118: #{_lambda_.1} parent=109 // pred_fallthru
          _
      $region110: #{_lambda_.1} parent=5 // pred_fallthru
        _
      %p2115 = scmp.le.s32.totalorder 2, %s23
      // Predicated region
      $region119: #{_lambda_.1} parent=5 // pred_check
        %p2116 = pneg %p2115
      $region120: #{_lambda_.1} parent=5 // pred_check_branch
        %2118 = sbr.rel (%p2116) target = $region122
      $region121: #{_lambda_.1} parent=5 // pred_region
        %s2119 = ssub.s32 %s23, 2
        // Predicated region
        $region123: #{_lambda_.1} parent=121 // pred_check
          %p2120 = pneg %p351
        $region124: #{_lambda_.1} parent=121 // pred_check_branch
          %2122 = sbr.rel (%p2120) target = $region126
        $region125: #{_lambda_.1} parent=121 // pred_region
          %s2123 = sand.u32 %s336, 1
          %s2124 = scalar_lea.sflag [#allocation4], %s2123
          %s2125 = sand.u32 %s336, 1
          %s2126 = smul.addr %s2125, 8
          %s2127 = scalar_lea.vmem [#allocation3], %s2126
          %2128 = dma.done %s2124, 128
        $region126: #{_lambda_.1} parent=121 // pred_fallthru
          _
      $region122: #{_lambda_.1} parent=5 // pred_fallthru
        _
    $region6: #{_lambda_.1} parent=1 // loop_footer
      %s27 = sadd.s32 1, %s23
    $region7: #{_lambda_.1} parent=1 // loop_footer_branch
      %22 = sbr.rel target = $region3
    $region8: #{_lambda_.1} parent=1 // loop_exit
      _
    %2129 = vsyncpa [#allocation4], 1
    %s2130 = scalar_lea.sflag [#allocation4], 1
    %2131 = vsyncpa %s2130, 1

</llo_original>
